<compile_context>
chip_gen: v7x
topology: tpu7x:2x2x1
jax: 0.10.0
libtpu: 0.0.40
codegen_flags: <defaults>
</compile_context>

<pallas_src>
import functools

import jax
import jax.numpy as jnp
from jax.experimental import pallas as pl
from jax.experimental.pallas import tpu as pltpu

EMBED_DIM = 512   # embedding_dim (LayerNorm(512) follows self.embed)
ENC_CH = 1280     # EfficientNet-b0 include_top=False feature channels
LN_EPS = 1e-5


def _round_up(x, m):
    return (x + m - 1) // m * m


def _cola_head_kernel(inv_keep, keep_threshold, apply_dropout,
                      feat_ref, bits_ref, w_e_ref, b_e_ref,
                      g_ref, bt_ref, w_l_ref, h_ref, proj_ref):
    """One row-tile of the fused head.

    feat_ref:  (TILE_R, 1280)  pooled encoder features (branch1 rows stacked
                               on top of branch2 rows, zero padded)
    bits_ref:  (TILE_R, 512)   uint32 random bits for dropout
    outputs:   h_ref   = tanh(LayerNorm(dropout(embed(feat))))   (TILE_R, 512)
               proj_ref = h @ W_l                                 (TILE_R, 512)
    The projection is computed for every row (branch-2 / pad rows are sliced
    away in the wrapper); the extra (rows x 512 x 512) work is negligible.
    """
    feat = feat_ref[...].astype(jnp.float32)

    # embed: Linear(1280 -> 512), weights pre-transposed to (1280, 512)
    emb = jnp.dot(feat, w_e_ref[...],
                  preferred_element_type=jnp.float32) + b_e_ref[...]

    if apply_dropout:
        # exact integer-space keep test: P(bits >= thr) = 1 - p
        keep = bits_ref[...] >= jnp.uint32(keep_threshold)
        emb = jnp.where(keep, emb * inv_keep, 0.0)

    # LayerNorm(512) + affine + tanh
    mu = jnp.mean(emb, axis=-1, keepdims=True)
    var = jnp.mean(jnp.square(emb - mu), axis=-1, keepdims=True)
    h = (emb - mu) * jax.lax.rsqrt(var + LN_EPS)
    h = jnp.tanh(h * g_ref[...] + bt_ref[...])

    h_ref[...] = h.astype(h_ref.dtype)
    # projection: Linear(512 -> 512, bias=False), weights pre-transposed
    proj_ref[...] = jnp.dot(h, w_l_ref[...],
                            preferred_element_type=jnp.float32
                            ).astype(proj_ref.dtype)


def cola_forward(x1_feat, x2_feat, params, dropout_key, p=0.2, training=True):
    """x1_feat / x2_feat: NCHW encoder feature maps, shape (B, 1280, Hf, Wf).

    Returns (y1, y2) matching Cola.forward: y1 = linear(tanh(ln(do(embed(pool(x1)))))),
    y2 = tanh(ln(do(embed(pool(x2))))).
    """
    assert 0.0 <= p < 1.0, "dropout p must be in [0, 1)"
    B, C, Hf, Wf = x1_feat.shape
    assert C == ENC_CH

    # Encoder tail: global average pool done in XLA, directly in NCHW (no
    # transpose, no big tensor ever enters the Pallas kernel).
    feat1 = jnp.mean(x1_feat.astype(jnp.float32), axis=(2, 3))   # (B, 1280)
    feat2 = jnp.mean(x2_feat.astype(jnp.float32), axis=(2, 3))   # (B, 1280)

    # Fuse both branches into one (2B, 1280) matrix, pad rows to the tile size
    # (multiple of 8 sublanes; 128 rows per grid step for large batches).
    rows = 2 * B
    tile_r = min(128, _round_up(rows, 8))
    rows_pad = _round_up(rows, tile_r)
    feat = jnp.concatenate([feat1, feat2], axis=0)               # (2B, 1280)
    if rows_pad > rows:
        feat = jnp.pad(feat, ((0, rows_pad - rows), (0, 0)))

    apply_dropout = bool(training) and p > 0.0
    if apply_dropout:
        bits = jax.random.bits(dropout_key, (rows_pad, EMBED_DIM), jnp.uint32)
        keep_threshold = min(int(round(p * (1 << 32))), (1 << 32) - 1)
        inv_keep = 1.0 / (1.0 - p)
    else:
        bits = jnp.zeros((rows_pad, EMBED_DIM), jnp.uint32)
        keep_threshold = 0
        inv_keep = 1.0

    w_e = jnp.transpose(params["embed_w"])             # (1280, 512)
    b_e = params["embed_b"].reshape(1, EMBED_DIM)      # (1, 512)
    gamma = params["ln_gamma"].reshape(1, EMBED_DIM)   # (1, 512)
    beta = params["ln_beta"].reshape(1, EMBED_DIM)     # (1, 512)
    w_l = jnp.transpose(params["lin_w"])               # (512, 512)

    n_tiles = rows_pad // tile_r
    row_spec_in = pl.BlockSpec((tile_r, ENC_CH), lambda i: (i, 0))
    bits_spec = pl.BlockSpec((tile_r, EMBED_DIM), lambda i: (i, 0))
    full = lambda shape: pl.BlockSpec(shape, lambda i: (0, 0))
    out_spec = pl.BlockSpec((tile_r, EMBED_DIM), lambda i: (i, 0))

    h_all, proj_all = pl.pallas_call(
        functools.partial(_cola_head_kernel, inv_keep, keep_threshold,
                          apply_dropout),
        out_shape=(jax.ShapeDtypeStruct((rows_pad, EMBED_DIM), jnp.float32),
                   jax.ShapeDtypeStruct((rows_pad, EMBED_DIM), jnp.float32)),
        grid_spec=pltpu.PrefetchScalarGridSpec(
            num_scalar_prefetch=0,
            grid=(n_tiles,),
            in_specs=[row_spec_in,                       # pooled features
                      bits_spec,                         # dropout bits
                      full((ENC_CH, EMBED_DIM)),         # w_e
                      full((1, EMBED_DIM)),              # b_e
                      full((1, EMBED_DIM)),              # gamma
                      full((1, EMBED_DIM)),              # beta
                      full((EMBED_DIM, EMBED_DIM))],     # w_l
            out_specs=(out_spec, out_spec)),
        compiler_params=pltpu.CompilerParams(
            dimension_semantics=("parallel",)),
    )(feat, bits, w_e, b_e, gamma, beta, w_l)

    y1 = proj_all[:B]          # linear(tanh(ln(...))) of branch 1
    y2 = h_all[B:2 * B]        # tanh(ln(...)) of branch 2
    return y1, y2


if __name__ == "__main__":
    key = jax.random.PRNGKey(0)
    k1, k2, k3, k4, kdrop = jax.random.split(key, 5)

    B, Hf, Wf = 2, 2, 2
    x1_feat = jax.random.normal(k1, (B, ENC_CH, Hf, Wf), jnp.float32)
    x2_feat = jax.random.normal(k2, (B, ENC_CH, Hf, Wf), jnp.float32)

    params = {
        # torch.nn.Linear(1280, 512): weight (512, 1280), bias (512,)
        "embed_w": jax.random.normal(k3, (EMBED_DIM, ENC_CH), jnp.float32) * 0.02,
        "embed_b": jnp.zeros((EMBED_DIM,), jnp.float32),
        # torch.nn.LayerNorm(512): default gamma=1, beta=0
        "ln_gamma": jnp.ones((EMBED_DIM,), jnp.float32),
        "ln_beta": jnp.zeros((EMBED_DIM,), jnp.float32),
        # torch.nn.Linear(512, 512, bias=False): weight (512, 512)
        "lin_w": jax.random.normal(k4, (EMBED_DIM, EMBED_DIM), jnp.float32) * 0.02,
    }

    y1, y2 = cola_forward(x1_feat, x2_feat, params, kdrop, p=0.2, training=True)
    jax.block_until_ready((y1, y2))
    assert y1.shape == (B, EMBED_DIM) and y1.dtype == jnp.float32
    assert y2.shape == (B, EMBED_DIM) and y2.dtype == jnp.float32
    assert bool(jnp.all(jnp.abs(y2) <= 1.0))  # y2 is a tanh output
    print("KERNEL_OK")
</pallas_src>

<mosaic_0001>
module attributes {stable_mosaic.version = 11 : i64} {
  func.func @_cola_head_kernel(%arg0: i32, %arg1: memref<8x1280xf32, #tpu.memory_space<vmem>>, %arg2: memref<8x512xi32, #tpu.memory_space<vmem>>, %arg3: memref<1280x512xf32, #tpu.memory_space<vmem>>, %arg4: memref<1x512xf32, #tpu.memory_space<vmem>>, %arg5: memref<1x512xf32, #tpu.memory_space<vmem>>, %arg6: memref<1x512xf32, #tpu.memory_space<vmem>>, %arg7: memref<512x512xf32, #tpu.memory_space<vmem>>, %arg8: memref<8x512xf32, #tpu.memory_space<vmem>>, %arg9: memref<8x512xf32, #tpu.memory_space<vmem>>) attributes {dimension_semantics = [#tpu.dimension_semantics<parallel>], iteration_bounds = array<i64: 1>, scalar_prefetch = 0 : i64, scratch_operands = 0 : i64, tpu.core_type = #tpu.core_type<tc>, window_params = [{transform_indices = @transform_0, window_bounds = array<i64: 8, 1280>}, {transform_indices = @transform_1, window_bounds = array<i64: 8, 512>}, {pipeline_mode = #tpu.pipeline_mode<synchronous>, transform_indices = @transform_2, window_bounds = array<i64: 1280, 512>}, {pipeline_mode = #tpu.pipeline_mode<synchronous>, transform_indices = @transform_3, window_bounds = array<i64: 1, 512>}, {pipeline_mode = #tpu.pipeline_mode<synchronous>, transform_indices = @transform_4, window_bounds = array<i64: 1, 512>}, {pipeline_mode = #tpu.pipeline_mode<synchronous>, transform_indices = @transform_5, window_bounds = array<i64: 1, 512>}, {pipeline_mode = #tpu.pipeline_mode<synchronous>, transform_indices = @transform_6, window_bounds = array<i64: 512, 512>}, {transform_indices = @transform_7, window_bounds = array<i64: 8, 512>}, {transform_indices = @transform_8, window_bounds = array<i64: 8, 512>}]} {
    %c0 = arith.constant 0 : index
    %c0_0 = arith.constant 0 : index
    %0 = vector.load %arg1[%c0, %c0_0] : memref<8x1280xf32, #tpu.memory_space<vmem>>, vector<8x1280xf32>
    %c0_1 = arith.constant 0 : index
    %c0_2 = arith.constant 0 : index
    %1 = vector.load %arg3[%c0_1, %c0_2] : memref<1280x512xf32, #tpu.memory_space<vmem>>, vector<1280x512xf32>
    %cst = arith.constant dense<0.000000e+00> : vector<8x512xf32>
    %2 = tpu.matmul %0, %1, %cst {dimension_numbers = #tpu.dot_dimension_numbers<[1], [0], [0], [1], [0, 0, 1, 1], [], []>} : vector<8x1280xf32>, vector<1280x512xf32>, vector<8x512xf32> -> vector<8x512xf32>
    %c0_3 = arith.constant 0 : index
    %c0_4 = arith.constant 0 : index
    %3 = vector.load %arg4[%c0_3, %c0_4] : memref<1x512xf32, #tpu.memory_space<vmem>>, vector<1x512xf32>
    %4 = vector.broadcast %3 : vector<1x512xf32> to vector<8x512xf32>
    %5 = arith.addf %2, %4 : vector<8x512xf32>
    %c0_5 = arith.constant 0 : index
    %c0_6 = arith.constant 0 : index
    %6 = vector.load %arg2[%c0_5, %c0_6] : memref<8x512xi32, #tpu.memory_space<vmem>>, vector<8x512xi32>
    %c858993459_i32 = arith.constant 858993459 : i32
    %7 = vector.broadcast %c858993459_i32 : i32 to vector<8x512xi32>
    %8 = arith.cmpi uge, %6, %7 : vector<8x512xi32>
    %cst_7 = arith.constant 1.250000e+00 : f32
    %9 = vector.broadcast %cst_7 : f32 to vector<8x512xf32>
    %10 = arith.mulf %5, %9 : vector<8x512xf32>
    %cst_8 = arith.constant 0.000000e+00 : f32
    %11 = vector.broadcast %cst_8 : f32 to vector<8x512xf32>
    %12 = arith.select %8, %10, %11 : vector<8x512xi1>, vector<8x512xf32>
    %cst_9 = arith.constant dense<0.000000e+00> : vector<8xf32>
    %13 = vector.multi_reduction <add>, %12, %cst_9 [1] : vector<8x512xf32> to vector<8xf32>
    %14 = vector.shape_cast %13 : vector<8xf32> to vector<8x1xf32>
    %cst_10 = arith.constant 5.120000e+02 : f32
    %15 = vector.broadcast %cst_10 : f32 to vector<8x1xf32>
    %16 = arith.divf %14, %15 : vector<8x1xf32>
    %17 = vector.broadcast %16 : vector<8x1xf32> to vector<8x512xf32>
    %18 = arith.subf %12, %17 : vector<8x512xf32>
    %19 = arith.mulf %18, %18 : vector<8x512xf32>
    %cst_11 = arith.constant dense<0.000000e+00> : vector<8xf32>
    %20 = vector.multi_reduction <add>, %19, %cst_11 [1] : vector<8x512xf32> to vector<8xf32>
    %21 = vector.shape_cast %20 : vector<8xf32> to vector<8x1xf32>
    %cst_12 = arith.constant 5.120000e+02 : f32
    %22 = vector.broadcast %cst_12 : f32 to vector<8x1xf32>
    %23 = arith.divf %21, %22 : vector<8x1xf32>
    %24 = vector.broadcast %16 : vector<8x1xf32> to vector<8x512xf32>
    %25 = arith.subf %12, %24 : vector<8x512xf32>
    %cst_13 = arith.constant 9.99999974E-6 : f32
    %26 = vector.broadcast %cst_13 : f32 to vector<8x1xf32>
    %27 = arith.addf %23, %26 : vector<8x1xf32>
    %28 = math.rsqrt %27 : vector<8x1xf32>
    %29 = vector.broadcast %28 : vector<8x1xf32> to vector<8x512xf32>
    %30 = arith.mulf %25, %29 : vector<8x512xf32>
    %c0_14 = arith.constant 0 : index
    %c0_15 = arith.constant 0 : index
    %31 = vector.load %arg5[%c0_14, %c0_15] : memref<1x512xf32, #tpu.memory_space<vmem>>, vector<1x512xf32>
    %32 = vector.broadcast %31 : vector<1x512xf32> to vector<8x512xf32>
    %33 = arith.mulf %30, %32 : vector<8x512xf32>
    %c0_16 = arith.constant 0 : index
    %c0_17 = arith.constant 0 : index
    %34 = vector.load %arg6[%c0_16, %c0_17] : memref<1x512xf32, #tpu.memory_space<vmem>>, vector<1x512xf32>
    %35 = vector.broadcast %34 : vector<1x512xf32> to vector<8x512xf32>
    %36 = arith.addf %33, %35 : vector<8x512xf32>
    %37 = math.tanh %36 : vector<8x512xf32>
    %c0_18 = arith.constant 0 : index
    %c0_19 = arith.constant 0 : index
    %38 = vector.load %arg8[%c0_18, %c0_19] : memref<8x512xf32, #tpu.memory_space<vmem>>, vector<8x512xf32>
    tpu.vector_store %arg8[%c0_18, %c0_19], %37 {strides = array<i32>} : memref<8x512xf32, #tpu.memory_space<vmem>>, vector<8x512xf32>,
    %c0_20 = arith.constant 0 : index
    %c0_21 = arith.constant 0 : index
    %39 = vector.load %arg7[%c0_20, %c0_21] : memref<512x512xf32, #tpu.memory_space<vmem>>, vector<512x512xf32>
    %cst_22 = arith.constant dense<0.000000e+00> : vector<8x512xf32>
    %40 = tpu.matmul %37, %39, %cst_22 {dimension_numbers = #tpu.dot_dimension_numbers<[1], [0], [0], [1], [0, 0, 1, 1], [], []>} : vector<8x512xf32>, vector<512x512xf32>, vector<8x512xf32> -> vector<8x512xf32>
    %c0_23 = arith.constant 0 : index
    %c0_24 = arith.constant 0 : index
    %41 = vector.load %arg9[%c0_23, %c0_24] : memref<8x512xf32, #tpu.memory_space<vmem>>, vector<8x512xf32>
    tpu.vector_store %arg9[%c0_23, %c0_24], %40 {strides = array<i32>} : memref<8x512xf32, #tpu.memory_space<vmem>>, vector<8x512xf32>,
    return
  }
  func.func @transform_0(%arg0: i32) -> (i32, i32) {
    %c0_i32 = arith.constant 0 : i32
    %c0_i32_0 = arith.constant 0 : i32
    return %arg0, %c0_i32 : i32, i32
  }
  func.func @transform_1(%arg0: i32) -> (i32, i32) {
    %c0_i32 = arith.constant 0 : i32
    %c0_i32_0 = arith.constant 0 : i32
    return %arg0, %c0_i32 : i32, i32
  }
  func.func @transform_2(%arg0: i32) -> (i32, i32) {
    %c0_i32 = arith.constant 0 : i32
    %c0_i32_0 = arith.constant 0 : i32
    %c0_i32_1 = arith.constant 0 : i32
    return %c0_i32, %c0_i32_0 : i32, i32
  }
  func.func @transform_3(%arg0: i32) -> (i32, i32) {
    %c0_i32 = arith.constant 0 : i32
    %c0_i32_0 = arith.constant 0 : i32
    %c0_i32_1 = arith.constant 0 : i32
    return %c0_i32, %c0_i32_0 : i32, i32
  }
  func.func @transform_4(%arg0: i32) -> (i32, i32) {
    %c0_i32 = arith.constant 0 : i32
    %c0_i32_0 = arith.constant 0 : i32
    %c0_i32_1 = arith.constant 0 : i32
    return %c0_i32, %c0_i32_0 : i32, i32
  }
  func.func @transform_5(%arg0: i32) -> (i32, i32) {
    %c0_i32 = arith.constant 0 : i32
    %c0_i32_0 = arith.constant 0 : i32
    %c0_i32_1 = arith.constant 0 : i32
    return %c0_i32, %c0_i32_0 : i32, i32
  }
  func.func @transform_6(%arg0: i32) -> (i32, i32) {
    %c0_i32 = arith.constant 0 : i32
    %c0_i32_0 = arith.constant 0 : i32
    %c0_i32_1 = arith.constant 0 : i32
    return %c0_i32, %c0_i32_0 : i32, i32
  }
  func.func @transform_7(%arg0: i32) -> (i32, i32) {
    %c0_i32 = arith.constant 0 : i32
    %c0_i32_0 = arith.constant 0 : i32
    return %arg0, %c0_i32 : i32, i32
  }
  func.func @transform_8(%arg0: i32) -> (i32, i32) {
    %c0_i32 = arith.constant 0 : i32
    %c0_i32_0 = arith.constant 0 : i32
    return %arg0, %c0_i32 : i32, i32
  }
}

</mosaic_0001>

<llo_original>
// kernel: tpu_custom_call.1
$region0: #{tpu_custom_call.1}
  #allocation0 [shape = 'u32[]', space=smem, size = 0x4, offset = 0x4, fixed_abs, tag = 'smem constant byte address 0x4 - core index']
  #allocation1 [shape = 'u32[144,128]{1,0:T(1,128)}', space=vmem, size = 0x12000, scoped, tag = 'internal scratch']
  %s0 = inlined_call_operand.hbm [shape: f32[8,1280], index: 0, kind: input, shape index: {}]
  %s1 = inlined_call_operand.hbm [shape: u32[8,512], index: 1, kind: input, shape index: {}]
  %s2 = inlined_call_operand.hbm [shape: f32[1280,512], index: 2, kind: input, shape index: {}]
  %s3 = inlined_call_operand.hbm [shape: f32[1,512], index: 3, kind: input, shape index: {}]
  %s4 = inlined_call_operand.hbm [shape: f32[1,512], index: 4, kind: input, shape index: {}]
  %s5 = inlined_call_operand.hbm [shape: f32[1,512], index: 5, kind: input, shape index: {}]
  %s6 = inlined_call_operand.hbm [shape: f32[512,512], index: 6, kind: input, shape index: {}]
  %s7 = inlined_call_operand.hbm [shape: f32[8,512], index: 7, kind: output, shape index: {0}]
  %s8 = inlined_call_operand.hbm [shape: f32[8,512], index: 8, kind: output, shape index: {1}]
  %9 = xla_tuple %s7, %s8
  %s10 = sld [smem:[#allocation0]]
  $region74: #{tpu_custom_call.1} parent=0
    _
  %s12 = ssub.s32 1, %s10
  %s13 = scalar_select 0, %s12, %s10
  $region1: #{tpu_custom_call.1} parent=0
    #allocation2 [shape = 'u8[40960]{0}', space=vmem, size = 0xa000, scoped, tag = 'input window, operand 0, single buffered']
    #allocation3 [shape = 's32[1]{0}', space=sflag, size = 0x4, scoped, tag = 'scoped memory for tpu_custom_call.1']
    #allocation4 [shape = 's32[1]{0}', space=sflag, size = 0x4, scoped, tag = 'scoped memory for tpu_custom_call.1']
    #allocation5 [shape = 'u8[16384]{0}', space=vmem, size = 0x4000, scoped, tag = 'input window, operand 1, single buffered']
    #allocation6 [shape = 's32[1]{0}', space=sflag, size = 0x4, scoped, tag = 'scoped memory for tpu_custom_call.1']
    #allocation7 [shape = 'u8[2621440]{0}', space=vmem, size = 0x280000, scoped, tag = 'input window, operand 2, single buffered']
    #allocation8 [shape = 'u8[2048]{0}', space=vmem, size = 0x800, scoped, tag = 'input window, operand 3, single buffered']
    #allocation9 [shape = 's32[1]{0}', space=sflag, size = 0x4, scoped, tag = 'scoped memory for tpu_custom_call.1']
    #allocation10 [shape = 'u8[2048]{0}', space=vmem, size = 0x800, scoped, tag = 'input window, operand 4, single buffered']
    #allocation11 [shape = 'u8[2048]{0}', space=vmem, size = 0x800, scoped, tag = 'input window, operand 5, single buffered']
    #allocation12 [shape = 's32[1]{0}', space=sflag, size = 0x4, scoped, tag = 'scoped memory for tpu_custom_call.1']
    #allocation13 [shape = 'u8[1048576]{0}', space=vmem, size = 0x100000, scoped, tag = 'input window, operand 6, single buffered']
    #allocation14 [shape = 'u8[16384]{0}', space=vmem, size = 0x4000, scoped, tag = 'output window, operand 0, single buffered']
    #allocation15 [shape = 'u8[16384]{0}', space=vmem, size = 0x4000, scoped, tag = 'output window, operand 1, single buffered']
    #allocation16 [shape = 's32[1]{0}', space=sflag, size = 0x4, scoped, tag = 'scoped memory for tpu_custom_call.1']
    %14 = vsyncpa [#allocation3], 0
    %15 = vsyncpa [#allocation6], 0
    %16 = vsyncpa [#allocation9], 0
    %17 = vsyncpa [#allocation12], 0
    %18 = vsyncpa [#allocation4], 0
    %19 = vsyncpa [#allocation16], 0
    // Predicated region
    $region2: #{tpu_custom_call.1} parent=1 // pred_check
      _
    $region3: #{tpu_custom_call.1} parent=1 // pred_check_branch
      %21 = sbr.rel (0) target = $region5
    $region4: #{tpu_custom_call.1} parent=1 // pred_region
      %s23 = ssub.s32 1280, 1280
      %24 = vsyncadd [#allocation3], %s23
      %s26 = sshll.u32 [#allocation2], 4
      %s27 = int_to_ptr.vmem [resolvable:$true] %s26
      %29 = dma.hbm_to_vmem [thread:$0]  %s0, 1280, %s27, [#allocation3]
    $region5: #{tpu_custom_call.1} parent=1 // pred_fallthru
      _
    // Predicated region
    $region6: #{tpu_custom_call.1} parent=1 // pred_check
      _
    $region7: #{tpu_custom_call.1} parent=1 // pred_check_branch
      %31 = sbr.rel (0) target = $region9
    $region8: #{tpu_custom_call.1} parent=1 // pred_region
      %s33 = ssub.s32 512, 512
      %34 = vsyncadd [#allocation6], %s33
      %s36 = sshll.u32 [#allocation5], 4
      %s37 = int_to_ptr.vmem [resolvable:$true] %s36
      %39 = dma.hbm_to_vmem [thread:$0]  %s1, 512, %s37, [#allocation6]
    $region9: #{tpu_custom_call.1} parent=1 // pred_fallthru
      _
    // Predicated region
    $region10: #{tpu_custom_call.1} parent=1 // pred_check
      _
    $region11: #{tpu_custom_call.1} parent=1 // pred_check_branch
      %41 = sbr.rel (0) target = $region13
    $region12: #{tpu_custom_call.1} parent=1 // pred_region
      %s43 = ssub.s32 81920, 81920
      %44 = vsyncadd [#allocation6], %s43
      %s45 = sshll.u32 [#allocation7], 4
      %s46 = int_to_ptr.vmem [resolvable:$true] %s45
      %51 = dma.hbm_to_vmem [thread:$0]  %s2, 81920, %s46, [#allocation6], 512, 512, 32
    $region13: #{tpu_custom_call.1} parent=1 // pred_fallthru
      _
    // Predicated region
    $region14: #{tpu_custom_call.1} parent=1 // pred_check
      _
    $region15: #{tpu_custom_call.1} parent=1 // pred_check_branch
      %53 = sbr.rel (0) target = $region17
    $region16: #{tpu_custom_call.1} parent=1 // pred_region
      %s55 = ssub.s32 64, 64
      %56 = vsyncadd [#allocation9], %s55
      %s58 = sshll.u32 [#allocation8], 4
      %s59 = int_to_ptr.vmem [resolvable:$true] %s58
      %61 = dma.hbm_to_vmem [thread:$0]  %s3, 64, %s59, [#allocation9]
    $region17: #{tpu_custom_call.1} parent=1 // pred_fallthru
      _
    // Predicated region
    $region18: #{tpu_custom_call.1} parent=1 // pred_check
      _
    $region19: #{tpu_custom_call.1} parent=1 // pred_check_branch
      %63 = sbr.rel (0) target = $region21
    $region20: #{tpu_custom_call.1} parent=1 // pred_region
      %s65 = ssub.s32 64, 64
      %66 = vsyncadd [#allocation9], %s65
      %s68 = sshll.u32 [#allocation10], 4
      %s69 = int_to_ptr.vmem [resolvable:$true] %s68
      %71 = dma.hbm_to_vmem [thread:$0]  %s4, 64, %s69, [#allocation9]
    $region21: #{tpu_custom_call.1} parent=1 // pred_fallthru
      _
    // Predicated region
    $region22: #{tpu_custom_call.1} parent=1 // pred_check
      _
    $region23: #{tpu_custom_call.1} parent=1 // pred_check_branch
      %73 = sbr.rel (0) target = $region25
    $region24: #{tpu_custom_call.1} parent=1 // pred_region
      %s75 = ssub.s32 64, 64
      %76 = vsyncadd [#allocation12], %s75
      %s78 = sshll.u32 [#allocation11], 4
      %s79 = int_to_ptr.vmem [resolvable:$true] %s78
      %81 = dma.hbm_to_vmem [thread:$0]  %s5, 64, %s79, [#allocation12]
    $region25: #{tpu_custom_call.1} parent=1 // pred_fallthru
      _
    // Predicated region
    $region26: #{tpu_custom_call.1} parent=1 // pred_check
      _
    $region27: #{tpu_custom_call.1} parent=1 // pred_check_branch
      %83 = sbr.rel (0) target = $region29
    $region28: #{tpu_custom_call.1} parent=1 // pred_region
      %s85 = ssub.s32 32768, 32768
      %86 = vsyncadd [#allocation12], %s85
      %s87 = sshll.u32 [#allocation13], 4
      %s88 = int_to_ptr.vmem [resolvable:$true] %s87
      %93 = dma.hbm_to_vmem [thread:$0]  %s6, 32768, %s88, [#allocation12], 512, 512, 32
    $region29: #{tpu_custom_call.1} parent=1 // pred_fallthru
      _
    // Predicated region
    $region30: #{tpu_custom_call.1} parent=1 // pred_check
      _
    $region31: #{tpu_custom_call.1} parent=1 // pred_check_branch
      %95 = sbr.rel (0) target = $region33
    $region32: #{tpu_custom_call.1} parent=1 // pred_region
      %96 = dma.done [#allocation3], 1280
    $region33: #{tpu_custom_call.1} parent=1 // pred_fallthru
      _
    // Predicated region
    $region34: #{tpu_custom_call.1} parent=1 // pred_check
      _
    $region35: #{tpu_custom_call.1} parent=1 // pred_check_branch
      %98 = sbr.rel (0) target = $region37
    $region36: #{tpu_custom_call.1} parent=1 // pred_region
      %99 = dma.done [#allocation6], 512
    $region37: #{tpu_custom_call.1} parent=1 // pred_fallthru
      _
    // Predicated region
    $region38: #{tpu_custom_call.1} parent=1 // pred_check
      _
    $region39: #{tpu_custom_call.1} parent=1 // pred_check_branch
      %101 = sbr.rel (0) target = $region41
    $region40: #{tpu_custom_call.1} parent=1 // pred_region
      %102 = dma.done [#allocation6], 81920
    $region41: #{tpu_custom_call.1} parent=1 // pred_fallthru
      _
    // Predicated region
    $region42: #{tpu_custom_call.1} parent=1 // pred_check
      _
    $region43: #{tpu_custom_call.1} parent=1 // pred_check_branch
      %104 = sbr.rel (0) target = $region45
    $region44: #{tpu_custom_call.1} parent=1 // pred_region
      %105 = dma.done [#allocation9], 64
    $region45: #{tpu_custom_call.1} parent=1 // pred_fallthru
      _
    // Predicated region
    $region46: #{tpu_custom_call.1} parent=1 // pred_check
      _
    $region47: #{tpu_custom_call.1} parent=1 // pred_check_branch
      %107 = sbr.rel (0) target = $region49
    $region48: #{tpu_custom_call.1} parent=1 // pred_region
      %108 = dma.done [#allocation9], 64
    $region49: #{tpu_custom_call.1} parent=1 // pred_fallthru
      _
    // Predicated region
    $region50: #{tpu_custom_call.1} parent=1 // pred_check
      _
    $region51: #{tpu_custom_call.1} parent=1 // pred_check_branch
      %110 = sbr.rel (0) target = $region53
    $region52: #{tpu_custom_call.1} parent=1 // pred_region
      %111 = dma.done [#allocation12], 64
    $region53: #{tpu_custom_call.1} parent=1 // pred_fallthru
      _
    // Predicated region
    $region54: #{tpu_custom_call.1} parent=1 // pred_check
      _
    $region55: #{tpu_custom_call.1} parent=1 // pred_check_branch
      %113 = sbr.rel (0) target = $region57
    $region56: #{tpu_custom_call.1} parent=1 // pred_region
      %114 = dma.done [#allocation12], 32768
    $region57: #{tpu_custom_call.1} parent=1 // pred_fallthru
      _
    %v115 = vld [vmem:[#allocation2] sm:$0xff]
    %v116 = vld [vmem:[#allocation2 + $0x8] sm:$0xff]
    %v117 = vld [vmem:[#allocation2 + $0x10] sm:$0xff]
    %v118 = vld [vmem:[#allocation2 + $0x18] sm:$0xff]
    %v119 = vld [vmem:[#allocation2 + $0x20] sm:$0xff]
    %v120 = vld [vmem:[#allocation2 + $0x28] sm:$0xff]
    %v121 = vld [vmem:[#allocation2 + $0x30] sm:$0xff]
    %v122 = vld [vmem:[#allocation2 + $0x38] sm:$0xff]
    %v123 = vld [vmem:[#allocation2 + $0x40] sm:$0xff]
    %v124 = vld [vmem:[#allocation2 + $0x48] sm:$0xff]
    %v125 = vld [vmem:[#allocation7] sm:$0xff]
    %v126 = vld [vmem:[#allocation7 + $0x8] sm:$0xff]
    %v127 = vld [vmem:[#allocation7 + $0x10] sm:$0xff]
    %v128 = vld [vmem:[#allocation7 + $0x18] sm:$0xff]
    %v129 = vld [vmem:[#allocation7 + $0x20] sm:$0xff]
    %v130 = vld [vmem:[#allocation7 + $0x28] sm:$0xff]
    %v131 = vld [vmem:[#allocation7 + $0x30] sm:$0xff]
    %v132 = vld [vmem:[#allocation7 + $0x38] sm:$0xff]
    %v133 = vld [vmem:[#allocation7 + $0x40] sm:$0xff]
    %v134 = vld [vmem:[#allocation7 + $0x48] sm:$0xff]
    %v135 = vld [vmem:[#allocation7 + $0x50] sm:$0xff]
    %v136 = vld [vmem:[#allocation7 + $0x58] sm:$0xff]
    %v137 = vld [vmem:[#allocation7 + $0x60] sm:$0xff]
    %v138 = vld [vmem:[#allocation7 + $0x68] sm:$0xff]
    %v139 = vld [vmem:[#allocation7 + $0x70] sm:$0xff]
    %v140 = vld [vmem:[#allocation7 + $0x78] sm:$0xff]
    %v141 = vld [vmem:[#allocation7 + $0x80] sm:$0xff]
    %v142 = vld [vmem:[#allocation7 + $0x88] sm:$0xff]
    %v143 = vld [vmem:[#allocation7 + $0x90] sm:$0xff]
    %v144 = vld [vmem:[#allocation7 + $0x98] sm:$0xff]
    %v145 = vld [vmem:[#allocation7 + $0xa0] sm:$0xff]
    %v146 = vld [vmem:[#allocation7 + $0xa8] sm:$0xff]
    %v147 = vld [vmem:[#allocation7 + $0xb0] sm:$0xff]
    %v148 = vld [vmem:[#allocation7 + $0xb8] sm:$0xff]
    %v149 = vld [vmem:[#allocation7 + $0xc0] sm:$0xff]
    %v150 = vld [vmem:[#allocation7 + $0xc8] sm:$0xff]
    %v151 = vld [vmem:[#allocation7 + $0xd0] sm:$0xff]
    %v152 = vld [vmem:[#allocation7 + $0xd8] sm:$0xff]
    %v153 = vld [vmem:[#allocation7 + $0xe0] sm:$0xff]
    %v154 = vld [vmem:[#allocation7 + $0xe8] sm:$0xff]
    %v155 = vld [vmem:[#allocation7 + $0xf0] sm:$0xff]
    %v156 = vld [vmem:[#allocation7 + $0xf8] sm:$0xff]
    %v157 = vld [vmem:[#allocation7 + $0x100] sm:$0xff]
    %v158 = vld [vmem:[#allocation7 + $0x108] sm:$0xff]
    %v159 = vld [vmem:[#allocation7 + $0x110] sm:$0xff]
    %v160 = vld [vmem:[#allocation7 + $0x118] sm:$0xff]
    %v161 = vld [vmem:[#allocation7 + $0x120] sm:$0xff]
    %v162 = vld [vmem:[#allocation7 + $0x128] sm:$0xff]
    %v163 = vld [vmem:[#allocation7 + $0x130] sm:$0xff]
    %v164 = vld [vmem:[#allocation7 + $0x138] sm:$0xff]
    %v165 = vld [vmem:[#allocation7 + $0x140] sm:$0xff]
    %v166 = vld [vmem:[#allocation7 + $0x148] sm:$0xff]
    %v167 = vld [vmem:[#allocation7 + $0x150] sm:$0xff]
    %v168 = vld [vmem:[#allocation7 + $0x158] sm:$0xff]
    %v169 = vld [vmem:[#allocation7 + $0x160] sm:$0xff]
    %v170 = vld [vmem:[#allocation7 + $0x168] sm:$0xff]
    %v171 = vld [vmem:[#allocation7 + $0x170] sm:$0xff]
    %v172 = vld [vmem:[#allocation7 + $0x178] sm:$0xff]
    %v173 = vld [vmem:[#allocation7 + $0x180] sm:$0xff]
    %v174 = vld [vmem:[#allocation7 + $0x188] sm:$0xff]
    %v175 = vld [vmem:[#allocation7 + $0x190] sm:$0xff]
    %v176 = vld [vmem:[#allocation7 + $0x198] sm:$0xff]
    %v177 = vld [vmem:[#allocation7 + $0x1a0] sm:$0xff]
    %v178 = vld [vmem:[#allocation7 + $0x1a8] sm:$0xff]
    %v179 = vld [vmem:[#allocation7 + $0x1b0] sm:$0xff]
    %v180 = vld [vmem:[#allocation7 + $0x1b8] sm:$0xff]
    %v181 = vld [vmem:[#allocation7 + $0x1c0] sm:$0xff]
    %v182 = vld [vmem:[#allocation7 + $0x1c8] sm:$0xff]
    %v183 = vld [vmem:[#allocation7 + $0x1d0] sm:$0xff]
    %v184 = vld [vmem:[#allocation7 + $0x1d8] sm:$0xff]
    %v185 = vld [vmem:[#allocation7 + $0x1e0] sm:$0xff]
    %v186 = vld [vmem:[#allocation7 + $0x1e8] sm:$0xff]
    %v187 = vld [vmem:[#allocation7 + $0x1f0] sm:$0xff]
    %v188 = vld [vmem:[#allocation7 + $0x1f8] sm:$0xff]
    %v189 = vld [vmem:[#allocation7 + $0x200] sm:$0xff]
    %v190 = vld [vmem:[#allocation7 + $0x208] sm:$0xff]
    %v191 = vld [vmem:[#allocation7 + $0x210] sm:$0xff]
    %v192 = vld [vmem:[#allocation7 + $0x218] sm:$0xff]
    %v193 = vld [vmem:[#allocation7 + $0x220] sm:$0xff]
    %v194 = vld [vmem:[#allocation7 + $0x228] sm:$0xff]
    %v195 = vld [vmem:[#allocation7 + $0x230] sm:$0xff]
    %v196 = vld [vmem:[#allocation7 + $0x238] sm:$0xff]
    %v197 = vld [vmem:[#allocation7 + $0x240] sm:$0xff]
    %v198 = vld [vmem:[#allocation7 + $0x248] sm:$0xff]
    %v199 = vld [vmem:[#allocation7 + $0x250] sm:$0xff]
    %v200 = vld [vmem:[#allocation7 + $0x258] sm:$0xff]
    %v201 = vld [vmem:[#allocation7 + $0x260] sm:$0xff]
    %v202 = vld [vmem:[#allocation7 + $0x268] sm:$0xff]
    %v203 = vld [vmem:[#allocation7 + $0x270] sm:$0xff]
    %v204 = vld [vmem:[#allocation7 + $0x278] sm:$0xff]
    %v205 = vld [vmem:[#allocation7 + $0x280] sm:$0xff]
    %v206 = vld [vmem:[#allocation7 + $0x288] sm:$0xff]
    %v207 = vld [vmem:[#allocation7 + $0x290] sm:$0xff]
    %v208 = vld [vmem:[#allocation7 + $0x298] sm:$0xff]
    %v209 = vld [vmem:[#allocation7 + $0x2a0] sm:$0xff]
    %v210 = vld [vmem:[#allocation7 + $0x2a8] sm:$0xff]
    %v211 = vld [vmem:[#allocation7 + $0x2b0] sm:$0xff]
    %v212 = vld [vmem:[#allocation7 + $0x2b8] sm:$0xff]
    %v213 = vld [vmem:[#allocation7 + $0x2c0] sm:$0xff]
    %v214 = vld [vmem:[#allocation7 + $0x2c8] sm:$0xff]
    %v215 = vld [vmem:[#allocation7 + $0x2d0] sm:$0xff]
    %v216 = vld [vmem:[#allocation7 + $0x2d8] sm:$0xff]
    %v217 = vld [vmem:[#allocation7 + $0x2e0] sm:$0xff]
    %v218 = vld [vmem:[#allocation7 + $0x2e8] sm:$0xff]
    %v219 = vld [vmem:[#allocation7 + $0x2f0] sm:$0xff]
    %v220 = vld [vmem:[#allocation7 + $0x2f8] sm:$0xff]
    %v221 = vld [vmem:[#allocation7 + $0x300] sm:$0xff]
    %v222 = vld [vmem:[#allocation7 + $0x308] sm:$0xff]
    %v223 = vld [vmem:[#allocation7 + $0x310] sm:$0xff]
    %v224 = vld [vmem:[#allocation7 + $0x318] sm:$0xff]
    %v225 = vld [vmem:[#allocation7 + $0x320] sm:$0xff]
    %v226 = vld [vmem:[#allocation7 + $0x328] sm:$0xff]
    %v227 = vld [vmem:[#allocation7 + $0x330] sm:$0xff]
    %v228 = vld [vmem:[#allocation7 + $0x338] sm:$0xff]
    %v229 = vld [vmem:[#allocation7 + $0x340] sm:$0xff]
    %v230 = vld [vmem:[#allocation7 + $0x348] sm:$0xff]
    %v231 = vld [vmem:[#allocation7 + $0x350] sm:$0xff]
    %v232 = vld [vmem:[#allocation7 + $0x358] sm:$0xff]
    %v233 = vld [vmem:[#allocation7 + $0x360] sm:$0xff]
    %v234 = vld [vmem:[#allocation7 + $0x368] sm:$0xff]
    %v235 = vld [vmem:[#allocation7 + $0x370] sm:$0xff]
    %v236 = vld [vmem:[#allocation7 + $0x378] sm:$0xff]
    %v237 = vld [vmem:[#allocation7 + $0x380] sm:$0xff]
    %v238 = vld [vmem:[#allocation7 + $0x388] sm:$0xff]
    %v239 = vld [vmem:[#allocation7 + $0x390] sm:$0xff]
    %v240 = vld [vmem:[#allocation7 + $0x398] sm:$0xff]
    %v241 = vld [vmem:[#allocation7 + $0x3a0] sm:$0xff]
    %v242 = vld [vmem:[#allocation7 + $0x3a8] sm:$0xff]
    %v243 = vld [vmem:[#allocation7 + $0x3b0] sm:$0xff]
    %v244 = vld [vmem:[#allocation7 + $0x3b8] sm:$0xff]
    %v245 = vld [vmem:[#allocation7 + $0x3c0] sm:$0xff]
    %v246 = vld [vmem:[#allocation7 + $0x3c8] sm:$0xff]
    %v247 = vld [vmem:[#allocation7 + $0x3d0] sm:$0xff]
    %v248 = vld [vmem:[#allocation7 + $0x3d8] sm:$0xff]
    %v249 = vld [vmem:[#allocation7 + $0x3e0] sm:$0xff]
    %v250 = vld [vmem:[#allocation7 + $0x3e8] sm:$0xff]
    %v251 = vld [vmem:[#allocation7 + $0x3f0] sm:$0xff]
    %v252 = vld [vmem:[#allocation7 + $0x3f8] sm:$0xff]
    %v253 = vld [vmem:[#allocation7 + $0x400] sm:$0xff]
    %v254 = vld [vmem:[#allocation7 + $0x408] sm:$0xff]
    %v255 = vld [vmem:[#allocation7 + $0x410] sm:$0xff]
    %v256 = vld [vmem:[#allocation7 + $0x418] sm:$0xff]
    %v257 = vld [vmem:[#allocation7 + $0x420] sm:$0xff]
    %v258 = vld [vmem:[#allocation7 + $0x428] sm:$0xff]
    %v259 = vld [vmem:[#allocation7 + $0x430] sm:$0xff]
    %v260 = vld [vmem:[#allocation7 + $0x438] sm:$0xff]
    %v261 = vld [vmem:[#allocation7 + $0x440] sm:$0xff]
    %v262 = vld [vmem:[#allocation7 + $0x448] sm:$0xff]
    %v263 = vld [vmem:[#allocation7 + $0x450] sm:$0xff]
    %v264 = vld [vmem:[#allocation7 + $0x458] sm:$0xff]
    %v265 = vld [vmem:[#allocation7 + $0x460] sm:$0xff]
    %v266 = vld [vmem:[#allocation7 + $0x468] sm:$0xff]
    %v267 = vld [vmem:[#allocation7 + $0x470] sm:$0xff]
    %v268 = vld [vmem:[#allocation7 + $0x478] sm:$0xff]
    %v269 = vld [vmem:[#allocation7 + $0x480] sm:$0xff]
    %v270 = vld [vmem:[#allocation7 + $0x488] sm:$0xff]
    %v271 = vld [vmem:[#allocation7 + $0x490] sm:$0xff]
    %v272 = vld [vmem:[#allocation7 + $0x498] sm:$0xff]
    %v273 = vld [vmem:[#allocation7 + $0x4a0] sm:$0xff]
    %v274 = vld [vmem:[#allocation7 + $0x4a8] sm:$0xff]
    %v275 = vld [vmem:[#allocation7 + $0x4b0] sm:$0xff]
    %v276 = vld [vmem:[#allocation7 + $0x4b8] sm:$0xff]
    %v277 = vld [vmem:[#allocation7 + $0x4c0] sm:$0xff]
    %v278 = vld [vmem:[#allocation7 + $0x4c8] sm:$0xff]
    %v279 = vld [vmem:[#allocation7 + $0x4d0] sm:$0xff]
    %v280 = vld [vmem:[#allocation7 + $0x4d8] sm:$0xff]
    %v281 = vld [vmem:[#allocation7 + $0x4e0] sm:$0xff]
    %v282 = vld [vmem:[#allocation7 + $0x4e8] sm:$0xff]
    %v283 = vld [vmem:[#allocation7 + $0x4f0] sm:$0xff]
    %v284 = vld [vmem:[#allocation7 + $0x4f8] sm:$0xff]
    %v285 = vld [vmem:[#allocation7 + $0x500] sm:$0xff]
    %v286 = vld [vmem:[#allocation7 + $0x508] sm:$0xff]
    %v287 = vld [vmem:[#allocation7 + $0x510] sm:$0xff]
    %v288 = vld [vmem:[#allocation7 + $0x518] sm:$0xff]
    %v289 = vld [vmem:[#allocation7 + $0x520] sm:$0xff]
    %v290 = vld [vmem:[#allocation7 + $0x528] sm:$0xff]
    %v291 = vld [vmem:[#allocation7 + $0x530] sm:$0xff]
    %v292 = vld [vmem:[#allocation7 + $0x538] sm:$0xff]
    %v293 = vld [vmem:[#allocation7 + $0x540] sm:$0xff]
    %v294 = vld [vmem:[#allocation7 + $0x548] sm:$0xff]
    %v295 = vld [vmem:[#allocation7 + $0x550] sm:$0xff]
    %v296 = vld [vmem:[#allocation7 + $0x558] sm:$0xff]
    %v297 = vld [vmem:[#allocation7 + $0x560] sm:$0xff]
    %v298 = vld [vmem:[#allocation7 + $0x568] sm:$0xff]
    %v299 = vld [vmem:[#allocation7 + $0x570] sm:$0xff]
    %v300 = vld [vmem:[#allocation7 + $0x578] sm:$0xff]
    %v301 = vld [vmem:[#allocation7 + $0x580] sm:$0xff]
    %v302 = vld [vmem:[#allocation7 + $0x588] sm:$0xff]
    %v303 = vld [vmem:[#allocation7 + $0x590] sm:$0xff]
    %v304 = vld [vmem:[#allocation7 + $0x598] sm:$0xff]
    %v305 = vld [vmem:[#allocation7 + $0x5a0] sm:$0xff]
    %v306 = vld [vmem:[#allocation7 + $0x5a8] sm:$0xff]
    %v307 = vld [vmem:[#allocation7 + $0x5b0] sm:$0xff]
    %v308 = vld [vmem:[#allocation7 + $0x5b8] sm:$0xff]
    %v309 = vld [vmem:[#allocation7 + $0x5c0] sm:$0xff]
    %v310 = vld [vmem:[#allocation7 + $0x5c8] sm:$0xff]
    %v311 = vld [vmem:[#allocation7 + $0x5d0] sm:$0xff]
    %v312 = vld [vmem:[#allocation7 + $0x5d8] sm:$0xff]
    %v313 = vld [vmem:[#allocation7 + $0x5e0] sm:$0xff]
    %v314 = vld [vmem:[#allocation7 + $0x5e8] sm:$0xff]
    %v315 = vld [vmem:[#allocation7 + $0x5f0] sm:$0xff]
    %v316 = vld [vmem:[#allocation7 + $0x5f8] sm:$0xff]
    %v317 = vld [vmem:[#allocation7 + $0x600] sm:$0xff]
    %v318 = vld [vmem:[#allocation7 + $0x608] sm:$0xff]
    %v319 = vld [vmem:[#allocation7 + $0x610] sm:$0xff]
    %v320 = vld [vmem:[#allocation7 + $0x618] sm:$0xff]
    %v321 = vld [vmem:[#allocation7 + $0x620] sm:$0xff]
    %v322 = vld [vmem:[#allocation7 + $0x628] sm:$0xff]
    %v323 = vld [vmem:[#allocation7 + $0x630] sm:$0xff]
    %v324 = vld [vmem:[#allocation7 + $0x638] sm:$0xff]
    %v325 = vld [vmem:[#allocation7 + $0x640] sm:$0xff]
    %v326 = vld [vmem:[#allocation7 + $0x648] sm:$0xff]
    %v327 = vld [vmem:[#allocation7 + $0x650] sm:$0xff]
    %v328 = vld [vmem:[#allocation7 + $0x658] sm:$0xff]
    %v329 = vld [vmem:[#allocation7 + $0x660] sm:$0xff]
    %v330 = vld [vmem:[#allocation7 + $0x668] sm:$0xff]
    %v331 = vld [vmem:[#allocation7 + $0x670] sm:$0xff]
    %v332 = vld [vmem:[#allocation7 + $0x678] sm:$0xff]
    %v333 = vld [vmem:[#allocation7 + $0x680] sm:$0xff]
    %v334 = vld [vmem:[#allocation7 + $0x688] sm:$0xff]
    %v335 = vld [vmem:[#allocation7 + $0x690] sm:$0xff]
    %v336 = vld [vmem:[#allocation7 + $0x698] sm:$0xff]
    %v337 = vld [vmem:[#allocation7 + $0x6a0] sm:$0xff]
    %v338 = vld [vmem:[#allocation7 + $0x6a8] sm:$0xff]
    %v339 = vld [vmem:[#allocation7 + $0x6b0] sm:$0xff]
    %v340 = vld [vmem:[#allocation7 + $0x6b8] sm:$0xff]
    %v341 = vld [vmem:[#allocation7 + $0x6c0] sm:$0xff]
    %v342 = vld [vmem:[#allocation7 + $0x6c8] sm:$0xff]
    %v343 = vld [vmem:[#allocation7 + $0x6d0] sm:$0xff]
    %v344 = vld [vmem:[#allocation7 + $0x6d8] sm:$0xff]
    %v345 = vld [vmem:[#allocation7 + $0x6e0] sm:$0xff]
    %v346 = vld [vmem:[#allocation7 + $0x6e8] sm:$0xff]
    %v347 = vld [vmem:[#allocation7 + $0x6f0] sm:$0xff]
    %v348 = vld [vmem:[#allocation7 + $0x6f8] sm:$0xff]
    %v349 = vld [vmem:[#allocation7 + $0x700] sm:$0xff]
    %v350 = vld [vmem:[#allocation7 + $0x708] sm:$0xff]
    %v351 = vld [vmem:[#allocation7 + $0x710] sm:$0xff]
    %v352 = vld [vmem:[#allocation7 + $0x718] sm:$0xff]
    %v353 = vld [vmem:[#allocation7 + $0x720] sm:$0xff]
    %v354 = vld [vmem:[#allocation7 + $0x728] sm:$0xff]
    %v355 = vld [vmem:[#allocation7 + $0x730] sm:$0xff]
    %v356 = vld [vmem:[#allocation7 + $0x738] sm:$0xff]
    %v357 = vld [vmem:[#allocation7 + $0x740] sm:$0xff]
    %v358 = vld [vmem:[#allocation7 + $0x748] sm:$0xff]
    %v359 = vld [vmem:[#allocation7 + $0x750] sm:$0xff]
    %v360 = vld [vmem:[#allocation7 + $0x758] sm:$0xff]
    %v361 = vld [vmem:[#allocation7 + $0x760] sm:$0xff]
    %v362 = vld [vmem:[#allocation7 + $0x768] sm:$0xff]
    %v363 = vld [vmem:[#allocation7 + $0x770] sm:$0xff]
    %v364 = vld [vmem:[#allocation7 + $0x778] sm:$0xff]
    %v365 = vld [vmem:[#allocation7 + $0x780] sm:$0xff]
    %v366 = vld [vmem:[#allocation7 + $0x788] sm:$0xff]
    %v367 = vld [vmem:[#allocation7 + $0x790] sm:$0xff]
    %v368 = vld [vmem:[#allocation7 + $0x798] sm:$0xff]
    %v369 = vld [vmem:[#allocation7 + $0x7a0] sm:$0xff]
    %v370 = vld [vmem:[#allocation7 + $0x7a8] sm:$0xff]
    %v371 = vld [vmem:[#allocation7 + $0x7b0] sm:$0xff]
    %v372 = vld [vmem:[#allocation7 + $0x7b8] sm:$0xff]
    %v373 = vld [vmem:[#allocation7 + $0x7c0] sm:$0xff]
    %v374 = vld [vmem:[#allocation7 + $0x7c8] sm:$0xff]
    %v375 = vld [vmem:[#allocation7 + $0x7d0] sm:$0xff]
    %v376 = vld [vmem:[#allocation7 + $0x7d8] sm:$0xff]
    %v377 = vld [vmem:[#allocation7 + $0x7e0] sm:$0xff]
    %v378 = vld [vmem:[#allocation7 + $0x7e8] sm:$0xff]
    %v379 = vld [vmem:[#allocation7 + $0x7f0] sm:$0xff]
    %v380 = vld [vmem:[#allocation7 + $0x7f8] sm:$0xff]
    %v381 = vld [vmem:[#allocation7 + $0x800] sm:$0xff]
    %v382 = vld [vmem:[#allocation7 + $0x808] sm:$0xff]
    %v383 = vld [vmem:[#allocation7 + $0x810] sm:$0xff]
    %v384 = vld [vmem:[#allocation7 + $0x818] sm:$0xff]
    %v385 = vld [vmem:[#allocation7 + $0x820] sm:$0xff]
    %v386 = vld [vmem:[#allocation7 + $0x828] sm:$0xff]
    %v387 = vld [vmem:[#allocation7 + $0x830] sm:$0xff]
    %v388 = vld [vmem:[#allocation7 + $0x838] sm:$0xff]
    %v389 = vld [vmem:[#allocation7 + $0x840] sm:$0xff]
    %v390 = vld [vmem:[#allocation7 + $0x848] sm:$0xff]
    %v391 = vld [vmem:[#allocation7 + $0x850] sm:$0xff]
    %v392 = vld [vmem:[#allocation7 + $0x858] sm:$0xff]
    %v393 = vld [vmem:[#allocation7 + $0x860] sm:$0xff]
    %v394 = vld [vmem:[#allocation7 + $0x868] sm:$0xff]
    %v395 = vld [vmem:[#allocation7 + $0x870] sm:$0xff]
    %v396 = vld [vmem:[#allocation7 + $0x878] sm:$0xff]
    %v397 = vld [vmem:[#allocation7 + $0x880] sm:$0xff]
    %v398 = vld [vmem:[#allocation7 + $0x888] sm:$0xff]
    %v399 = vld [vmem:[#allocation7 + $0x890] sm:$0xff]
    %v400 = vld [vmem:[#allocation7 + $0x898] sm:$0xff]
    %v401 = vld [vmem:[#allocation7 + $0x8a0] sm:$0xff]
    %v402 = vld [vmem:[#allocation7 + $0x8a8] sm:$0xff]
    %v403 = vld [vmem:[#allocation7 + $0x8b0] sm:$0xff]
    %v404 = vld [vmem:[#allocation7 + $0x8b8] sm:$0xff]
    %v405 = vld [vmem:[#allocation7 + $0x8c0] sm:$0xff]
    %v406 = vld [vmem:[#allocation7 + $0x8c8] sm:$0xff]
    %v407 = vld [vmem:[#allocation7 + $0x8d0] sm:$0xff]
    %v408 = vld [vmem:[#allocation7 + $0x8d8] sm:$0xff]
    %v409 = vld [vmem:[#allocation7 + $0x8e0] sm:$0xff]
    %v410 = vld [vmem:[#allocation7 + $0x8e8] sm:$0xff]
    %v411 = vld [vmem:[#allocation7 + $0x8f0] sm:$0xff]
    %v412 = vld [vmem:[#allocation7 + $0x8f8] sm:$0xff]
    %v413 = vld [vmem:[#allocation7 + $0x900] sm:$0xff]
    %v414 = vld [vmem:[#allocation7 + $0x908] sm:$0xff]
    %v415 = vld [vmem:[#allocation7 + $0x910] sm:$0xff]
    %v416 = vld [vmem:[#allocation7 + $0x918] sm:$0xff]
    %v417 = vld [vmem:[#allocation7 + $0x920] sm:$0xff]
    %v418 = vld [vmem:[#allocation7 + $0x928] sm:$0xff]
    %v419 = vld [vmem:[#allocation7 + $0x930] sm:$0xff]
    %v420 = vld [vmem:[#allocation7 + $0x938] sm:$0xff]
    %v421 = vld [vmem:[#allocation7 + $0x940] sm:$0xff]
    %v422 = vld [vmem:[#allocation7 + $0x948] sm:$0xff]
    %v423 = vld [vmem:[#allocation7 + $0x950] sm:$0xff]
    %v424 = vld [vmem:[#allocation7 + $0x958] sm:$0xff]
    %v425 = vld [vmem:[#allocation7 + $0x960] sm:$0xff]
    %v426 = vld [vmem:[#allocation7 + $0x968] sm:$0xff]
    %v427 = vld [vmem:[#allocation7 + $0x970] sm:$0xff]
    %v428 = vld [vmem:[#allocation7 + $0x978] sm:$0xff]
    %v429 = vld [vmem:[#allocation7 + $0x980] sm:$0xff]
    %v430 = vld [vmem:[#allocation7 + $0x988] sm:$0xff]
    %v431 = vld [vmem:[#allocation7 + $0x990] sm:$0xff]
    %v432 = vld [vmem:[#allocation7 + $0x998] sm:$0xff]
    %v433 = vld [vmem:[#allocation7 + $0x9a0] sm:$0xff]
    %v434 = vld [vmem:[#allocation7 + $0x9a8] sm:$0xff]
    %v435 = vld [vmem:[#allocation7 + $0x9b0] sm:$0xff]
    %v436 = vld [vmem:[#allocation7 + $0x9b8] sm:$0xff]
    %v437 = vld [vmem:[#allocation7 + $0x9c0] sm:$0xff]
    %v438 = vld [vmem:[#allocation7 + $0x9c8] sm:$0xff]
    %v439 = vld [vmem:[#allocation7 + $0x9d0] sm:$0xff]
    %v440 = vld [vmem:[#allocation7 + $0x9d8] sm:$0xff]
    %v441 = vld [vmem:[#allocation7 + $0x9e0] sm:$0xff]
    %v442 = vld [vmem:[#allocation7 + $0x9e8] sm:$0xff]
    %v443 = vld [vmem:[#allocation7 + $0x9f0] sm:$0xff]
    %v444 = vld [vmem:[#allocation7 + $0x9f8] sm:$0xff]
    %v445 = vld [vmem:[#allocation7 + $0xa00] sm:$0xff]
    %v446 = vld [vmem:[#allocation7 + $0xa08] sm:$0xff]
    %v447 = vld [vmem:[#allocation7 + $0xa10] sm:$0xff]
    %v448 = vld [vmem:[#allocation7 + $0xa18] sm:$0xff]
    %v449 = vld [vmem:[#allocation7 + $0xa20] sm:$0xff]
    %v450 = vld [vmem:[#allocation7 + $0xa28] sm:$0xff]
    %v451 = vld [vmem:[#allocation7 + $0xa30] sm:$0xff]
    %v452 = vld [vmem:[#allocation7 + $0xa38] sm:$0xff]
    %v453 = vld [vmem:[#allocation7 + $0xa40] sm:$0xff]
    %v454 = vld [vmem:[#allocation7 + $0xa48] sm:$0xff]
    %v455 = vld [vmem:[#allocation7 + $0xa50] sm:$0xff]
    %v456 = vld [vmem:[#allocation7 + $0xa58] sm:$0xff]
    %v457 = vld [vmem:[#allocation7 + $0xa60] sm:$0xff]
    %v458 = vld [vmem:[#allocation7 + $0xa68] sm:$0xff]
    %v459 = vld [vmem:[#allocation7 + $0xa70] sm:$0xff]
    %v460 = vld [vmem:[#allocation7 + $0xa78] sm:$0xff]
    %v461 = vld [vmem:[#allocation7 + $0xa80] sm:$0xff]
    %v462 = vld [vmem:[#allocation7 + $0xa88] sm:$0xff]
    %v463 = vld [vmem:[#allocation7 + $0xa90] sm:$0xff]
    %v464 = vld [vmem:[#allocation7 + $0xa98] sm:$0xff]
    %v465 = vld [vmem:[#allocation7 + $0xaa0] sm:$0xff]
    %v466 = vld [vmem:[#allocation7 + $0xaa8] sm:$0xff]
    %v467 = vld [vmem:[#allocation7 + $0xab0] sm:$0xff]
    %v468 = vld [vmem:[#allocation7 + $0xab8] sm:$0xff]
    %v469 = vld [vmem:[#allocation7 + $0xac0] sm:$0xff]
    %v470 = vld [vmem:[#allocation7 + $0xac8] sm:$0xff]
    %v471 = vld [vmem:[#allocation7 + $0xad0] sm:$0xff]
    %v472 = vld [vmem:[#allocation7 + $0xad8] sm:$0xff]
    %v473 = vld [vmem:[#allocation7 + $0xae0] sm:$0xff]
    %v474 = vld [vmem:[#allocation7 + $0xae8] sm:$0xff]
    %v475 = vld [vmem:[#allocation7 + $0xaf0] sm:$0xff]
    %v476 = vld [vmem:[#allocation7 + $0xaf8] sm:$0xff]
    %v477 = vld [vmem:[#allocation7 + $0xb00] sm:$0xff]
    %v478 = vld [vmem:[#allocation7 + $0xb08] sm:$0xff]
    %v479 = vld [vmem:[#allocation7 + $0xb10] sm:$0xff]
    %v480 = vld [vmem:[#allocation7 + $0xb18] sm:$0xff]
    %v481 = vld [vmem:[#allocation7 + $0xb20] sm:$0xff]
    %v482 = vld [vmem:[#allocation7 + $0xb28] sm:$0xff]
    %v483 = vld [vmem:[#allocation7 + $0xb30] sm:$0xff]
    %v484 = vld [vmem:[#allocation7 + $0xb38] sm:$0xff]
    %v485 = vld [vmem:[#allocation7 + $0xb40] sm:$0xff]
    %v486 = vld [vmem:[#allocation7 + $0xb48] sm:$0xff]
    %v487 = vld [vmem:[#allocation7 + $0xb50] sm:$0xff]
    %v488 = vld [vmem:[#allocation7 + $0xb58] sm:$0xff]
    %v489 = vld [vmem:[#allocation7 + $0xb60] sm:$0xff]
    %v490 = vld [vmem:[#allocation7 + $0xb68] sm:$0xff]
    %v491 = vld [vmem:[#allocation7 + $0xb70] sm:$0xff]
    %v492 = vld [vmem:[#allocation7 + $0xb78] sm:$0xff]
    %v493 = vld [vmem:[#allocation7 + $0xb80] sm:$0xff]
    %v494 = vld [vmem:[#allocation7 + $0xb88] sm:$0xff]
    %v495 = vld [vmem:[#allocation7 + $0xb90] sm:$0xff]
    %v496 = vld [vmem:[#allocation7 + $0xb98] sm:$0xff]
    %v497 = vld [vmem:[#allocation7 + $0xba0] sm:$0xff]
    %v498 = vld [vmem:[#allocation7 + $0xba8] sm:$0xff]
    %v499 = vld [vmem:[#allocation7 + $0xbb0] sm:$0xff]
    %v500 = vld [vmem:[#allocation7 + $0xbb8] sm:$0xff]
    %v501 = vld [vmem:[#allocation7 + $0xbc0] sm:$0xff]
    %v502 = vld [vmem:[#allocation7 + $0xbc8] sm:$0xff]
    %v503 = vld [vmem:[#allocation7 + $0xbd0] sm:$0xff]
    %v504 = vld [vmem:[#allocation7 + $0xbd8] sm:$0xff]
    %v505 = vld [vmem:[#allocation7 + $0xbe0] sm:$0xff]
    %v506 = vld [vmem:[#allocation7 + $0xbe8] sm:$0xff]
    %v507 = vld [vmem:[#allocation7 + $0xbf0] sm:$0xff]
    %v508 = vld [vmem:[#allocation7 + $0xbf8] sm:$0xff]
    %v509 = vld [vmem:[#allocation7 + $0xc00] sm:$0xff]
    %v510 = vld [vmem:[#allocation7 + $0xc08] sm:$0xff]
    %v511 = vld [vmem:[#allocation7 + $0xc10] sm:$0xff]
    %v512 = vld [vmem:[#allocation7 + $0xc18] sm:$0xff]
    %v513 = vld [vmem:[#allocation7 + $0xc20] sm:$0xff]
    %v514 = vld [vmem:[#allocation7 + $0xc28] sm:$0xff]
    %v515 = vld [vmem:[#allocation7 + $0xc30] sm:$0xff]
    %v516 = vld [vmem:[#allocation7 + $0xc38] sm:$0xff]
    %v517 = vld [vmem:[#allocation7 + $0xc40] sm:$0xff]
    %v518 = vld [vmem:[#allocation7 + $0xc48] sm:$0xff]
    %v519 = vld [vmem:[#allocation7 + $0xc50] sm:$0xff]
    %v520 = vld [vmem:[#allocation7 + $0xc58] sm:$0xff]
    %v521 = vld [vmem:[#allocation7 + $0xc60] sm:$0xff]
    %v522 = vld [vmem:[#allocation7 + $0xc68] sm:$0xff]
    %v523 = vld [vmem:[#allocation7 + $0xc70] sm:$0xff]
    %v524 = vld [vmem:[#allocation7 + $0xc78] sm:$0xff]
    %v525 = vld [vmem:[#allocation7 + $0xc80] sm:$0xff]
    %v526 = vld [vmem:[#allocation7 + $0xc88] sm:$0xff]
    %v527 = vld [vmem:[#allocation7 + $0xc90] sm:$0xff]
    %v528 = vld [vmem:[#allocation7 + $0xc98] sm:$0xff]
    %v529 = vld [vmem:[#allocation7 + $0xca0] sm:$0xff]
    %v530 = vld [vmem:[#allocation7 + $0xca8] sm:$0xff]
    %v531 = vld [vmem:[#allocation7 + $0xcb0] sm:$0xff]
    %v532 = vld [vmem:[#allocation7 + $0xcb8] sm:$0xff]
    %v533 = vld [vmem:[#allocation7 + $0xcc0] sm:$0xff]
    %v534 = vld [vmem:[#allocation7 + $0xcc8] sm:$0xff]
    %v535 = vld [vmem:[#allocation7 + $0xcd0] sm:$0xff]
    %v536 = vld [vmem:[#allocation7 + $0xcd8] sm:$0xff]
    %v537 = vld [vmem:[#allocation7 + $0xce0] sm:$0xff]
    %v538 = vld [vmem:[#allocation7 + $0xce8] sm:$0xff]
    %v539 = vld [vmem:[#allocation7 + $0xcf0] sm:$0xff]
    %v540 = vld [vmem:[#allocation7 + $0xcf8] sm:$0xff]
    %v541 = vld [vmem:[#allocation7 + $0xd00] sm:$0xff]
    %v542 = vld [vmem:[#allocation7 + $0xd08] sm:$0xff]
    %v543 = vld [vmem:[#allocation7 + $0xd10] sm:$0xff]
    %v544 = vld [vmem:[#allocation7 + $0xd18] sm:$0xff]
    %v545 = vld [vmem:[#allocation7 + $0xd20] sm:$0xff]
    %v546 = vld [vmem:[#allocation7 + $0xd28] sm:$0xff]
    %v547 = vld [vmem:[#allocation7 + $0xd30] sm:$0xff]
    %v548 = vld [vmem:[#allocation7 + $0xd38] sm:$0xff]
    %v549 = vld [vmem:[#allocation7 + $0xd40] sm:$0xff]
    %v550 = vld [vmem:[#allocation7 + $0xd48] sm:$0xff]
    %v551 = vld [vmem:[#allocation7 + $0xd50] sm:$0xff]
    %v552 = vld [vmem:[#allocation7 + $0xd58] sm:$0xff]
    %v553 = vld [vmem:[#allocation7 + $0xd60] sm:$0xff]
    %v554 = vld [vmem:[#allocation7 + $0xd68] sm:$0xff]
    %v555 = vld [vmem:[#allocation7 + $0xd70] sm:$0xff]
    %v556 = vld [vmem:[#allocation7 + $0xd78] sm:$0xff]
    %v557 = vld [vmem:[#allocation7 + $0xd80] sm:$0xff]
    %v558 = vld [vmem:[#allocation7 + $0xd88] sm:$0xff]
    %v559 = vld [vmem:[#allocation7 + $0xd90] sm:$0xff]
    %v560 = vld [vmem:[#allocation7 + $0xd98] sm:$0xff]
    %v561 = vld [vmem:[#allocation7 + $0xda0] sm:$0xff]
    %v562 = vld [vmem:[#allocation7 + $0xda8] sm:$0xff]
    %v563 = vld [vmem:[#allocation7 + $0xdb0] sm:$0xff]
    %v564 = vld [vmem:[#allocation7 + $0xdb8] sm:$0xff]
    %v565 = vld [vmem:[#allocation7 + $0xdc0] sm:$0xff]
    %v566 = vld [vmem:[#allocation7 + $0xdc8] sm:$0xff]
    %v567 = vld [vmem:[#allocation7 + $0xdd0] sm:$0xff]
    %v568 = vld [vmem:[#allocation7 + $0xdd8] sm:$0xff]
    %v569 = vld [vmem:[#allocation7 + $0xde0] sm:$0xff]
    %v570 = vld [vmem:[#allocation7 + $0xde8] sm:$0xff]
    %v571 = vld [vmem:[#allocation7 + $0xdf0] sm:$0xff]
    %v572 = vld [vmem:[#allocation7 + $0xdf8] sm:$0xff]
    %v573 = vld [vmem:[#allocation7 + $0xe00] sm:$0xff]
    %v574 = vld [vmem:[#allocation7 + $0xe08] sm:$0xff]
    %v575 = vld [vmem:[#allocation7 + $0xe10] sm:$0xff]
    %v576 = vld [vmem:[#allocation7 + $0xe18] sm:$0xff]
    %v577 = vld [vmem:[#allocation7 + $0xe20] sm:$0xff]
    %v578 = vld [vmem:[#allocation7 + $0xe28] sm:$0xff]
    %v579 = vld [vmem:[#allocation7 + $0xe30] sm:$0xff]
    %v580 = vld [vmem:[#allocation7 + $0xe38] sm:$0xff]
    %v581 = vld [vmem:[#allocation7 + $0xe40] sm:$0xff]
    %v582 = vld [vmem:[#allocation7 + $0xe48] sm:$0xff]
    %v583 = vld [vmem:[#allocation7 + $0xe50] sm:$0xff]
    %v584 = vld [vmem:[#allocation7 + $0xe58] sm:$0xff]
    %v585 = vld [vmem:[#allocation7 + $0xe60] sm:$0xff]
    %v586 = vld [vmem:[#allocation7 + $0xe68] sm:$0xff]
    %v587 = vld [vmem:[#allocation7 + $0xe70] sm:$0xff]
    %v588 = vld [vmem:[#allocation7 + $0xe78] sm:$0xff]
    %v589 = vld [vmem:[#allocation7 + $0xe80] sm:$0xff]
    %v590 = vld [vmem:[#allocation7 + $0xe88] sm:$0xff]
    %v591 = vld [vmem:[#allocation7 + $0xe90] sm:$0xff]
    %v592 = vld [vmem:[#allocation7 + $0xe98] sm:$0xff]
    %v593 = vld [vmem:[#allocation7 + $0xea0] sm:$0xff]
    %v594 = vld [vmem:[#allocation7 + $0xea8] sm:$0xff]
    %v595 = vld [vmem:[#allocation7 + $0xeb0] sm:$0xff]
    %v596 = vld [vmem:[#allocation7 + $0xeb8] sm:$0xff]
    %v597 = vld [vmem:[#allocation7 + $0xec0] sm:$0xff]
    %v598 = vld [vmem:[#allocation7 + $0xec8] sm:$0xff]
    %v599 = vld [vmem:[#allocation7 + $0xed0] sm:$0xff]
    %v600 = vld [vmem:[#allocation7 + $0xed8] sm:$0xff]
    %v601 = vld [vmem:[#allocation7 + $0xee0] sm:$0xff]
    %v602 = vld [vmem:[#allocation7 + $0xee8] sm:$0xff]
    %v603 = vld [vmem:[#allocation7 + $0xef0] sm:$0xff]
    %v604 = vld [vmem:[#allocation7 + $0xef8] sm:$0xff]
    %v605 = vld [vmem:[#allocation7 + $0xf00] sm:$0xff]
    %v606 = vld [vmem:[#allocation7 + $0xf08] sm:$0xff]
    %v607 = vld [vmem:[#allocation7 + $0xf10] sm:$0xff]
    %v608 = vld [vmem:[#allocation7 + $0xf18] sm:$0xff]
    %v609 = vld [vmem:[#allocation7 + $0xf20] sm:$0xff]
    %v610 = vld [vmem:[#allocation7 + $0xf28] sm:$0xff]
    %v611 = vld [vmem:[#allocation7 + $0xf30] sm:$0xff]
    %v612 = vld [vmem:[#allocation7 + $0xf38] sm:$0xff]
    %v613 = vld [vmem:[#allocation7 + $0xf40] sm:$0xff]
    %v614 = vld [vmem:[#allocation7 + $0xf48] sm:$0xff]
    %v615 = vld [vmem:[#allocation7 + $0xf50] sm:$0xff]
    %v616 = vld [vmem:[#allocation7 + $0xf58] sm:$0xff]
    %v617 = vld [vmem:[#allocation7 + $0xf60] sm:$0xff]
    %v618 = vld [vmem:[#allocation7 + $0xf68] sm:$0xff]
    %v619 = vld [vmem:[#allocation7 + $0xf70] sm:$0xff]
    %v620 = vld [vmem:[#allocation7 + $0xf78] sm:$0xff]
    %v621 = vld [vmem:[#allocation7 + $0xf80] sm:$0xff]
    %v622 = vld [vmem:[#allocation7 + $0xf88] sm:$0xff]
    %v623 = vld [vmem:[#allocation7 + $0xf90] sm:$0xff]
    %v624 = vld [vmem:[#allocation7 + $0xf98] sm:$0xff]
    %v625 = vld [vmem:[#allocation7 + $0xfa0] sm:$0xff]
    %v626 = vld [vmem:[#allocation7 + $0xfa8] sm:$0xff]
    %v627 = vld [vmem:[#allocation7 + $0xfb0] sm:$0xff]
    %v628 = vld [vmem:[#allocation7 + $0xfb8] sm:$0xff]
    %v629 = vld [vmem:[#allocation7 + $0xfc0] sm:$0xff]
    %v630 = vld [vmem:[#allocation7 + $0xfc8] sm:$0xff]
    %v631 = vld [vmem:[#allocation7 + $0xfd0] sm:$0xff]
    %v632 = vld [vmem:[#allocation7 + $0xfd8] sm:$0xff]
    %v633 = vld [vmem:[#allocation7 + $0xfe0] sm:$0xff]
    %v634 = vld [vmem:[#allocation7 + $0xfe8] sm:$0xff]
    %v635 = vld [vmem:[#allocation7 + $0xff0] sm:$0xff]
    %v636 = vld [vmem:[#allocation7 + $0xff8] sm:$0xff]
    %v637 = vld [vmem:[#allocation7 + $0x1000] sm:$0xff]
    %v638 = vld [vmem:[#allocation7 + $0x1008] sm:$0xff]
    %v639 = vld [vmem:[#allocation7 + $0x1010] sm:$0xff]
    %v640 = vld [vmem:[#allocation7 + $0x1018] sm:$0xff]
    %v641 = vld [vmem:[#allocation7 + $0x1020] sm:$0xff]
    %v642 = vld [vmem:[#allocation7 + $0x1028] sm:$0xff]
    %v643 = vld [vmem:[#allocation7 + $0x1030] sm:$0xff]
    %v644 = vld [vmem:[#allocation7 + $0x1038] sm:$0xff]
    %v645 = vld [vmem:[#allocation7 + $0x1040] sm:$0xff]
    %v646 = vld [vmem:[#allocation7 + $0x1048] sm:$0xff]
    %v647 = vld [vmem:[#allocation7 + $0x1050] sm:$0xff]
    %v648 = vld [vmem:[#allocation7 + $0x1058] sm:$0xff]
    %v649 = vld [vmem:[#allocation7 + $0x1060] sm:$0xff]
    %v650 = vld [vmem:[#allocation7 + $0x1068] sm:$0xff]
    %v651 = vld [vmem:[#allocation7 + $0x1070] sm:$0xff]
    %v652 = vld [vmem:[#allocation7 + $0x1078] sm:$0xff]
    %v653 = vld [vmem:[#allocation7 + $0x1080] sm:$0xff]
    %v654 = vld [vmem:[#allocation7 + $0x1088] sm:$0xff]
    %v655 = vld [vmem:[#allocation7 + $0x1090] sm:$0xff]
    %v656 = vld [vmem:[#allocation7 + $0x1098] sm:$0xff]
    %v657 = vld [vmem:[#allocation7 + $0x10a0] sm:$0xff]
    %v658 = vld [vmem:[#allocation7 + $0x10a8] sm:$0xff]
    %v659 = vld [vmem:[#allocation7 + $0x10b0] sm:$0xff]
    %v660 = vld [vmem:[#allocation7 + $0x10b8] sm:$0xff]
    %v661 = vld [vmem:[#allocation7 + $0x10c0] sm:$0xff]
    %v662 = vld [vmem:[#allocation7 + $0x10c8] sm:$0xff]
    %v663 = vld [vmem:[#allocation7 + $0x10d0] sm:$0xff]
    %v664 = vld [vmem:[#allocation7 + $0x10d8] sm:$0xff]
    %v665 = vld [vmem:[#allocation7 + $0x10e0] sm:$0xff]
    %v666 = vld [vmem:[#allocation7 + $0x10e8] sm:$0xff]
    %v667 = vld [vmem:[#allocation7 + $0x10f0] sm:$0xff]
    %v668 = vld [vmem:[#allocation7 + $0x10f8] sm:$0xff]
    %v669 = vld [vmem:[#allocation7 + $0x1100] sm:$0xff]
    %v670 = vld [vmem:[#allocation7 + $0x1108] sm:$0xff]
    %v671 = vld [vmem:[#allocation7 + $0x1110] sm:$0xff]
    %v672 = vld [vmem:[#allocation7 + $0x1118] sm:$0xff]
    %v673 = vld [vmem:[#allocation7 + $0x1120] sm:$0xff]
    %v674 = vld [vmem:[#allocation7 + $0x1128] sm:$0xff]
    %v675 = vld [vmem:[#allocation7 + $0x1130] sm:$0xff]
    %v676 = vld [vmem:[#allocation7 + $0x1138] sm:$0xff]
    %v677 = vld [vmem:[#allocation7 + $0x1140] sm:$0xff]
    %v678 = vld [vmem:[#allocation7 + $0x1148] sm:$0xff]
    %v679 = vld [vmem:[#allocation7 + $0x1150] sm:$0xff]
    %v680 = vld [vmem:[#allocation7 + $0x1158] sm:$0xff]
    %v681 = vld [vmem:[#allocation7 + $0x1160] sm:$0xff]
    %v682 = vld [vmem:[#allocation7 + $0x1168] sm:$0xff]
    %v683 = vld [vmem:[#allocation7 + $0x1170] sm:$0xff]
    %v684 = vld [vmem:[#allocation7 + $0x1178] sm:$0xff]
    %v685 = vld [vmem:[#allocation7 + $0x1180] sm:$0xff]
    %v686 = vld [vmem:[#allocation7 + $0x1188] sm:$0xff]
    %v687 = vld [vmem:[#allocation7 + $0x1190] sm:$0xff]
    %v688 = vld [vmem:[#allocation7 + $0x1198] sm:$0xff]
    %v689 = vld [vmem:[#allocation7 + $0x11a0] sm:$0xff]
    %v690 = vld [vmem:[#allocation7 + $0x11a8] sm:$0xff]
    %v691 = vld [vmem:[#allocation7 + $0x11b0] sm:$0xff]
    %v692 = vld [vmem:[#allocation7 + $0x11b8] sm:$0xff]
    %v693 = vld [vmem:[#allocation7 + $0x11c0] sm:$0xff]
    %v694 = vld [vmem:[#allocation7 + $0x11c8] sm:$0xff]
    %v695 = vld [vmem:[#allocation7 + $0x11d0] sm:$0xff]
    %v696 = vld [vmem:[#allocation7 + $0x11d8] sm:$0xff]
    %v697 = vld [vmem:[#allocation7 + $0x11e0] sm:$0xff]
    %v698 = vld [vmem:[#allocation7 + $0x11e8] sm:$0xff]
    %v699 = vld [vmem:[#allocation7 + $0x11f0] sm:$0xff]
    %v700 = vld [vmem:[#allocation7 + $0x11f8] sm:$0xff]
    %v701 = vld [vmem:[#allocation7 + $0x1200] sm:$0xff]
    %v702 = vld [vmem:[#allocation7 + $0x1208] sm:$0xff]
    %v703 = vld [vmem:[#allocation7 + $0x1210] sm:$0xff]
    %v704 = vld [vmem:[#allocation7 + $0x1218] sm:$0xff]
    %v705 = vld [vmem:[#allocation7 + $0x1220] sm:$0xff]
    %v706 = vld [vmem:[#allocation7 + $0x1228] sm:$0xff]
    %v707 = vld [vmem:[#allocation7 + $0x1230] sm:$0xff]
    %v708 = vld [vmem:[#allocation7 + $0x1238] sm:$0xff]
    %v709 = vld [vmem:[#allocation7 + $0x1240] sm:$0xff]
    %v710 = vld [vmem:[#allocation7 + $0x1248] sm:$0xff]
    %v711 = vld [vmem:[#allocation7 + $0x1250] sm:$0xff]
    %v712 = vld [vmem:[#allocation7 + $0x1258] sm:$0xff]
    %v713 = vld [vmem:[#allocation7 + $0x1260] sm:$0xff]
    %v714 = vld [vmem:[#allocation7 + $0x1268] sm:$0xff]
    %v715 = vld [vmem:[#allocation7 + $0x1270] sm:$0xff]
    %v716 = vld [vmem:[#allocation7 + $0x1278] sm:$0xff]
    %v717 = vld [vmem:[#allocation7 + $0x1280] sm:$0xff]
    %v718 = vld [vmem:[#allocation7 + $0x1288] sm:$0xff]
    %v719 = vld [vmem:[#allocation7 + $0x1290] sm:$0xff]
    %v720 = vld [vmem:[#allocation7 + $0x1298] sm:$0xff]
    %v721 = vld [vmem:[#allocation7 + $0x12a0] sm:$0xff]
    %v722 = vld [vmem:[#allocation7 + $0x12a8] sm:$0xff]
    %v723 = vld [vmem:[#allocation7 + $0x12b0] sm:$0xff]
    %v724 = vld [vmem:[#allocation7 + $0x12b8] sm:$0xff]
    %v725 = vld [vmem:[#allocation7 + $0x12c0] sm:$0xff]
    %v726 = vld [vmem:[#allocation7 + $0x12c8] sm:$0xff]
    %v727 = vld [vmem:[#allocation7 + $0x12d0] sm:$0xff]
    %v728 = vld [vmem:[#allocation7 + $0x12d8] sm:$0xff]
    %v729 = vld [vmem:[#allocation7 + $0x12e0] sm:$0xff]
    %v730 = vld [vmem:[#allocation7 + $0x12e8] sm:$0xff]
    %v731 = vld [vmem:[#allocation7 + $0x12f0] sm:$0xff]
    %v732 = vld [vmem:[#allocation7 + $0x12f8] sm:$0xff]
    %v733 = vld [vmem:[#allocation7 + $0x1300] sm:$0xff]
    %v734 = vld [vmem:[#allocation7 + $0x1308] sm:$0xff]
    %v735 = vld [vmem:[#allocation7 + $0x1310] sm:$0xff]
    %v736 = vld [vmem:[#allocation7 + $0x1318] sm:$0xff]
    %v737 = vld [vmem:[#allocation7 + $0x1320] sm:$0xff]
    %v738 = vld [vmem:[#allocation7 + $0x1328] sm:$0xff]
    %v739 = vld [vmem:[#allocation7 + $0x1330] sm:$0xff]
    %v740 = vld [vmem:[#allocation7 + $0x1338] sm:$0xff]
    %v741 = vld [vmem:[#allocation7 + $0x1340] sm:$0xff]
    %v742 = vld [vmem:[#allocation7 + $0x1348] sm:$0xff]
    %v743 = vld [vmem:[#allocation7 + $0x1350] sm:$0xff]
    %v744 = vld [vmem:[#allocation7 + $0x1358] sm:$0xff]
    %v745 = vld [vmem:[#allocation7 + $0x1360] sm:$0xff]
    %v746 = vld [vmem:[#allocation7 + $0x1368] sm:$0xff]
    %v747 = vld [vmem:[#allocation7 + $0x1370] sm:$0xff]
    %v748 = vld [vmem:[#allocation7 + $0x1378] sm:$0xff]
    %v749 = vld [vmem:[#allocation7 + $0x1380] sm:$0xff]
    %v750 = vld [vmem:[#allocation7 + $0x1388] sm:$0xff]
    %v751 = vld [vmem:[#allocation7 + $0x1390] sm:$0xff]
    %v752 = vld [vmem:[#allocation7 + $0x1398] sm:$0xff]
    %v753 = vld [vmem:[#allocation7 + $0x13a0] sm:$0xff]
    %v754 = vld [vmem:[#allocation7 + $0x13a8] sm:$0xff]
    %v755 = vld [vmem:[#allocation7 + $0x13b0] sm:$0xff]
    %v756 = vld [vmem:[#allocation7 + $0x13b8] sm:$0xff]
    %v757 = vld [vmem:[#allocation7 + $0x13c0] sm:$0xff]
    %v758 = vld [vmem:[#allocation7 + $0x13c8] sm:$0xff]
    %v759 = vld [vmem:[#allocation7 + $0x13d0] sm:$0xff]
    %v760 = vld [vmem:[#allocation7 + $0x13d8] sm:$0xff]
    %v761 = vld [vmem:[#allocation7 + $0x13e0] sm:$0xff]
    %v762 = vld [vmem:[#allocation7 + $0x13e8] sm:$0xff]
    %v763 = vld [vmem:[#allocation7 + $0x13f0] sm:$0xff]
    %v764 = vld [vmem:[#allocation7 + $0x13f8] sm:$0xff]
    %v765 = vld [vmem:[#allocation8] sm:$0xf]
    %v767 = vlaneseq
    %v768 = vshrl.u32 %v767, 7
    %v769 = vsub.s32 0, %v768
    %v770 = vrot.slane %v765, %v769
    %v771 = vlaneseq
    %v772 = vshrl.u32 %v771, 7
    %v773 = vsub.s32 1, %v772
    %v774 = vrot.slane %v765, %v773
    %v775 = vlaneseq
    %v776 = vshrl.u32 %v775, 7
    %v777 = vsub.s32 2, %v776
    %v778 = vrot.slane %v765, %v777
    %v779 = vlaneseq
    %v780 = vshrl.u32 %v779, 7
    %v781 = vsub.s32 3, %v780
    %v782 = vrot.slane %v765, %v781
    %787 = vmatprep.subr.mxu0 %v126
    %788 = vmatpush1.msra.mxu0 %v125
    %789 = vmatprep.subr.mxu0 %v130
    %790 = vmatpush1.msra.mxu0 %v129
    %791 = vmatprep.subr.mxu0 %v134
    %792 = vmatpush1.msra.mxu0 %v133
    %793 = vmatprep.subr.mxu0 %v138
    %794 = vmatpush1.msra.mxu0 %v137
    %795 = vmatprep.subr.mxu0 %v142
    %796 = vmatpush1.msra.mxu0 %v141
    %797 = vmatprep.subr.mxu0 %v146
    %798 = vmatpush1.msra.mxu0 %v145
    %799 = vmatprep.subr.mxu0 %v150
    %800 = vmatpush1.msra.mxu0 %v149
    %801 = vmatprep.subr.mxu0 %v154
    %802 = vmatpush1.msra.mxu0 %v153
    %803 = vmatprep.subr.mxu0 %v158
    %804 = vmatpush1.msra.mxu0 %v157
    %805 = vmatprep.subr.mxu0 %v162
    %806 = vmatpush1.msra.mxu0 %v161
    %807 = vmatprep.subr.mxu0 %v166
    %808 = vmatpush1.msra.mxu0 %v165
    %809 = vmatprep.subr.mxu0 %v170
    %810 = vmatpush1.msra.mxu0 %v169
    %811 = vmatprep.subr.mxu0 %v174
    %812 = vmatpush1.msra.mxu0 %v173
    %813 = vmatprep.subr.mxu0 %v178
    %814 = vmatpush1.msra.mxu0 %v177
    %815 = vmatprep.subr.mxu0 %v182
    %816 = vmatpush1.msra.mxu0 %v181
    %817 = vmatprep.subr.mxu0 %v186
    %818 = vmatpush1.msra.mxu0 %v185
    %819 = vmatprep.subr.mxu0 %v190
    %820 = vmatpush1.msra.mxu0 %v189
    %821 = vmatprep.subr.mxu0 %v194
    %822 = vmatpush1.msra.mxu0 %v193
    %823 = vmatprep.subr.mxu0 %v198
    %824 = vmatpush1.msra.mxu0 %v197
    %825 = vmatprep.subr.mxu0 %v202
    %826 = vmatpush1.msra.mxu0 %v201
    %827 = vmatprep.subr.mxu0 %v206
    %828 = vmatpush1.msra.mxu0 %v205
    %829 = vmatprep.subr.mxu0 %v210
    %830 = vmatpush1.msra.mxu0 %v209
    %831 = vmatprep.subr.mxu0 %v214
    %832 = vmatpush1.msra.mxu0 %v213
    %833 = vmatprep.subr.mxu0 %v218
    %834 = vmatpush1.msra.mxu0 %v217
    %835 = vmatprep.subr.mxu0 %v222
    %836 = vmatpush1.msra.mxu0 %v221
    %837 = vmatprep.subr.mxu0 %v226
    %838 = vmatpush1.msra.mxu0 %v225
    %839 = vmatprep.subr.mxu0 %v230
    %840 = vmatpush1.msra.mxu0 %v229
    %841 = vmatprep.subr.mxu0 %v234
    %842 = vmatpush1.msra.mxu0 %v233
    %843 = vmatprep.subr.mxu0 %v238
    %844 = vmatpush1.msra.mxu0 %v237
    %845 = vmatprep.subr.mxu0 %v242
    %846 = vmatpush1.msra.mxu0 %v241
    %847 = vmatprep.subr.mxu0 %v246
    %848 = vmatpush1.msra.mxu0 %v245
    %849 = vmatprep.subr.mxu0 %v250
    %850 = vmatpush1.msra.mxu0 %v249
    %851 = vmatprep.mubr.f32.mxu0 %v116
    %852 = vmatmul.mubr.f32.gmra.mrb[0].mxu0 %v115
    %v853 = vpop.f32.mrb[0].mxu0
    %v854 = vadd.f32 %v770, %v853
    %v855 = vpop.f32.mrb[0].mxu0
    %v856 = vadd.f32 %v774, %v855
    %857 = vdwg.mxu0
    %858 = vmatprep.subr.mxu0 %v254
    %859 = vmatpush1.msra.mxu0 %v253
    %860 = vmatprep.subr.mxu0 %v258
    %861 = vmatpush1.msra.mxu0 %v257
    %862 = vmatprep.subr.mxu0 %v262
    %863 = vmatpush1.msra.mxu0 %v261
    %864 = vmatprep.subr.mxu0 %v266
    %865 = vmatpush1.msra.mxu0 %v265
    %866 = vmatprep.subr.mxu0 %v270
    %867 = vmatpush1.msra.mxu0 %v269
    %868 = vmatprep.subr.mxu0 %v274
    %869 = vmatpush1.msra.mxu0 %v273
    %870 = vmatprep.subr.mxu0 %v278
    %871 = vmatpush1.msra.mxu0 %v277
    %872 = vmatprep.subr.mxu0 %v282
    %873 = vmatpush1.msra.mxu0 %v281
    %874 = vmatprep.subr.mxu0 %v286
    %875 = vmatpush1.msra.mxu0 %v285
    %876 = vmatprep.subr.mxu0 %v290
    %877 = vmatpush1.msra.mxu0 %v289
    %878 = vmatprep.subr.mxu0 %v294
    %879 = vmatpush1.msra.mxu0 %v293
    %880 = vmatprep.subr.mxu0 %v298
    %881 = vmatpush1.msra.mxu0 %v297
    %882 = vmatprep.subr.mxu0 %v302
    %883 = vmatpush1.msra.mxu0 %v301
    %884 = vmatprep.subr.mxu0 %v306
    %885 = vmatpush1.msra.mxu0 %v305
    %886 = vmatprep.subr.mxu0 %v310
    %887 = vmatpush1.msra.mxu0 %v309
    %888 = vmatprep.subr.mxu0 %v314
    %889 = vmatpush1.msra.mxu0 %v313
    %890 = vmatprep.subr.mxu0 %v318
    %891 = vmatpush1.msra.mxu0 %v317
    %892 = vmatprep.subr.mxu0 %v322
    %893 = vmatpush1.msra.mxu0 %v321
    %894 = vmatprep.subr.mxu0 %v326
    %895 = vmatpush1.msra.mxu0 %v325
    %896 = vmatprep.subr.mxu0 %v330
    %897 = vmatpush1.msra.mxu0 %v329
    %898 = vmatprep.subr.mxu0 %v334
    %899 = vmatpush1.msra.mxu0 %v333
    %900 = vmatprep.subr.mxu0 %v338
    %901 = vmatpush1.msra.mxu0 %v337
    %902 = vmatprep.subr.mxu0 %v342
    %903 = vmatpush1.msra.mxu0 %v341
    %904 = vmatprep.subr.mxu0 %v346
    %905 = vmatpush1.msra.mxu0 %v345
    %906 = vmatprep.subr.mxu0 %v350
    %907 = vmatpush1.msra.mxu0 %v349
    %908 = vmatprep.subr.mxu0 %v354
    %909 = vmatpush1.msra.mxu0 %v353
    %910 = vmatprep.subr.mxu0 %v358
    %911 = vmatpush1.msra.mxu0 %v357
    %912 = vmatprep.subr.mxu0 %v362
    %913 = vmatpush1.msra.mxu0 %v361
    %914 = vmatprep.subr.mxu0 %v366
    %915 = vmatpush1.msra.mxu0 %v365
    %916 = vmatprep.subr.mxu0 %v370
    %917 = vmatpush1.msra.mxu0 %v369
    %918 = vmatprep.subr.mxu0 %v374
    %919 = vmatpush1.msra.mxu0 %v373
    %920 = vmatprep.subr.mxu0 %v378
    %921 = vmatpush1.msra.mxu0 %v377
    %922 = vmatprep.mubr.f32.mxu0 %v118
    %923 = vmatmul.mubr.f32.gmra.mrb[0].mxu0 %v117
    %v924 = vpop.f32.mrb[0].mxu0
    %v925 = vadd.f32 %v854, %v924
    %v926 = vpop.f32.mrb[0].mxu0
    %v927 = vadd.f32 %v856, %v926
    %928 = vdwg.mxu0
    %929 = vmatprep.subr.mxu0 %v382
    %930 = vmatpush1.msra.mxu0 %v381
    %931 = vmatprep.subr.mxu0 %v386
    %932 = vmatpush1.msra.mxu0 %v385
    %933 = vmatprep.subr.mxu0 %v390
    %934 = vmatpush1.msra.mxu0 %v389
    %935 = vmatprep.subr.mxu0 %v394
    %936 = vmatpush1.msra.mxu0 %v393
    %937 = vmatprep.subr.mxu0 %v398
    %938 = vmatpush1.msra.mxu0 %v397
    %939 = vmatprep.subr.mxu0 %v402
    %940 = vmatpush1.msra.mxu0 %v401
    %941 = vmatprep.subr.mxu0 %v406
    %942 = vmatpush1.msra.mxu0 %v405
    %943 = vmatprep.subr.mxu0 %v410
    %944 = vmatpush1.msra.mxu0 %v409
    %945 = vmatprep.subr.mxu0 %v414
    %946 = vmatpush1.msra.mxu0 %v413
    %947 = vmatprep.subr.mxu0 %v418
    %948 = vmatpush1.msra.mxu0 %v417
    %949 = vmatprep.subr.mxu0 %v422
    %950 = vmatpush1.msra.mxu0 %v421
    %951 = vmatprep.subr.mxu0 %v426
    %952 = vmatpush1.msra.mxu0 %v425
    %953 = vmatprep.subr.mxu0 %v430
    %954 = vmatpush1.msra.mxu0 %v429
    %955 = vmatprep.subr.mxu0 %v434
    %956 = vmatpush1.msra.mxu0 %v433
    %957 = vmatprep.subr.mxu0 %v438
    %958 = vmatpush1.msra.mxu0 %v437
    %959 = vmatprep.subr.mxu0 %v442
    %960 = vmatpush1.msra.mxu0 %v441
    %961 = vmatprep.subr.mxu0 %v446
    %962 = vmatpush1.msra.mxu0 %v445
    %963 = vmatprep.subr.mxu0 %v450
    %964 = vmatpush1.msra.mxu0 %v449
    %965 = vmatprep.subr.mxu0 %v454
    %966 = vmatpush1.msra.mxu0 %v453
    %967 = vmatprep.subr.mxu0 %v458
    %968 = vmatpush1.msra.mxu0 %v457
    %969 = vmatprep.subr.mxu0 %v462
    %970 = vmatpush1.msra.mxu0 %v461
    %971 = vmatprep.subr.mxu0 %v466
    %972 = vmatpush1.msra.mxu0 %v465
    %973 = vmatprep.subr.mxu0 %v470
    %974 = vmatpush1.msra.mxu0 %v469
    %975 = vmatprep.subr.mxu0 %v474
    %976 = vmatpush1.msra.mxu0 %v473
    %977 = vmatprep.subr.mxu0 %v478
    %978 = vmatpush1.msra.mxu0 %v477
    %979 = vmatprep.subr.mxu0 %v482
    %980 = vmatpush1.msra.mxu0 %v481
    %981 = vmatprep.subr.mxu0 %v486
    %982 = vmatpush1.msra.mxu0 %v485
    %983 = vmatprep.subr.mxu0 %v490
    %984 = vmatpush1.msra.mxu0 %v489
    %985 = vmatprep.subr.mxu0 %v494
    %986 = vmatpush1.msra.mxu0 %v493
    %987 = vmatprep.subr.mxu0 %v498
    %988 = vmatpush1.msra.mxu0 %v497
    %989 = vmatprep.subr.mxu0 %v502
    %990 = vmatpush1.msra.mxu0 %v501
    %991 = vmatprep.subr.mxu0 %v506
    %992 = vmatpush1.msra.mxu0 %v505
    %993 = vmatprep.mubr.f32.mxu0 %v120
    %994 = vmatmul.mubr.f32.gmra.mrb[0].mxu0 %v119
    %v995 = vpop.f32.mrb[0].mxu0
    %v996 = vadd.f32 %v925, %v995
    %v997 = vpop.f32.mrb[0].mxu0
    %v998 = vadd.f32 %v927, %v997
    %999 = vdwg.mxu0
    %1000 = vmatprep.subr.mxu0 %v510
    %1001 = vmatpush1.msra.mxu0 %v509
    %1002 = vmatprep.subr.mxu0 %v514
    %1003 = vmatpush1.msra.mxu0 %v513
    %1004 = vmatprep.subr.mxu0 %v518
    %1005 = vmatpush1.msra.mxu0 %v517
    %1006 = vmatprep.subr.mxu0 %v522
    %1007 = vmatpush1.msra.mxu0 %v521
    %1008 = vmatprep.subr.mxu0 %v526
    %1009 = vmatpush1.msra.mxu0 %v525
    %1010 = vmatprep.subr.mxu0 %v530
    %1011 = vmatpush1.msra.mxu0 %v529
    %1012 = vmatprep.subr.mxu0 %v534
    %1013 = vmatpush1.msra.mxu0 %v533
    %1014 = vmatprep.subr.mxu0 %v538
    %1015 = vmatpush1.msra.mxu0 %v537
    %1016 = vmatprep.subr.mxu0 %v542
    %1017 = vmatpush1.msra.mxu0 %v541
    %1018 = vmatprep.subr.mxu0 %v546
    %1019 = vmatpush1.msra.mxu0 %v545
    %1020 = vmatprep.subr.mxu0 %v550
    %1021 = vmatpush1.msra.mxu0 %v549
    %1022 = vmatprep.subr.mxu0 %v554
    %1023 = vmatpush1.msra.mxu0 %v553
    %1024 = vmatprep.subr.mxu0 %v558
    %1025 = vmatpush1.msra.mxu0 %v557
    %1026 = vmatprep.subr.mxu0 %v562
    %1027 = vmatpush1.msra.mxu0 %v561
    %1028 = vmatprep.subr.mxu0 %v566
    %1029 = vmatpush1.msra.mxu0 %v565
    %1030 = vmatprep.subr.mxu0 %v570
    %1031 = vmatpush1.msra.mxu0 %v569
    %1032 = vmatprep.subr.mxu0 %v574
    %1033 = vmatpush1.msra.mxu0 %v573
    %1034 = vmatprep.subr.mxu0 %v578
    %1035 = vmatpush1.msra.mxu0 %v577
    %1036 = vmatprep.subr.mxu0 %v582
    %1037 = vmatpush1.msra.mxu0 %v581
    %1038 = vmatprep.subr.mxu0 %v586
    %1039 = vmatpush1.msra.mxu0 %v585
    %1040 = vmatprep.subr.mxu0 %v590
    %1041 = vmatpush1.msra.mxu0 %v589
    %1042 = vmatprep.subr.mxu0 %v594
    %1043 = vmatpush1.msra.mxu0 %v593
    %1044 = vmatprep.subr.mxu0 %v598
    %1045 = vmatpush1.msra.mxu0 %v597
    %1046 = vmatprep.subr.mxu0 %v602
    %1047 = vmatpush1.msra.mxu0 %v601
    %1048 = vmatprep.subr.mxu0 %v606
    %1049 = vmatpush1.msra.mxu0 %v605
    %1050 = vmatprep.subr.mxu0 %v610
    %1051 = vmatpush1.msra.mxu0 %v609
    %1052 = vmatprep.subr.mxu0 %v614
    %1053 = vmatpush1.msra.mxu0 %v613
    %1054 = vmatprep.subr.mxu0 %v618
    %1055 = vmatpush1.msra.mxu0 %v617
    %1056 = vmatprep.subr.mxu0 %v622
    %1057 = vmatpush1.msra.mxu0 %v621
    %1058 = vmatprep.subr.mxu0 %v626
    %1059 = vmatpush1.msra.mxu0 %v625
    %1060 = vmatprep.subr.mxu0 %v630
    %1061 = vmatpush1.msra.mxu0 %v629
    %1062 = vmatprep.subr.mxu0 %v634
    %1063 = vmatpush1.msra.mxu0 %v633
    %1064 = vmatprep.mubr.f32.mxu0 %v122
    %1065 = vmatmul.mubr.f32.gmra.mrb[0].mxu0 %v121
    %v1066 = vpop.f32.mrb[0].mxu0
    %v1067 = vadd.f32 %v996, %v1066
    %v1068 = vpop.f32.mrb[0].mxu0
    %v1069 = vadd.f32 %v998, %v1068
    %1070 = vdwg.mxu0
    %1071 = vmatprep.subr.mxu0 %v638
    %1072 = vmatpush1.msra.mxu0 %v637
    %1073 = vmatprep.subr.mxu0 %v642
    %1074 = vmatpush1.msra.mxu0 %v641
    %1075 = vmatprep.subr.mxu0 %v646
    %1076 = vmatpush1.msra.mxu0 %v645
    %1077 = vmatprep.subr.mxu0 %v650
    %1078 = vmatpush1.msra.mxu0 %v649
    %1079 = vmatprep.subr.mxu0 %v654
    %1080 = vmatpush1.msra.mxu0 %v653
    %1081 = vmatprep.subr.mxu0 %v658
    %1082 = vmatpush1.msra.mxu0 %v657
    %1083 = vmatprep.subr.mxu0 %v662
    %1084 = vmatpush1.msra.mxu0 %v661
    %1085 = vmatprep.subr.mxu0 %v666
    %1086 = vmatpush1.msra.mxu0 %v665
    %1087 = vmatprep.subr.mxu0 %v670
    %1088 = vmatpush1.msra.mxu0 %v669
    %1089 = vmatprep.subr.mxu0 %v674
    %1090 = vmatpush1.msra.mxu0 %v673
    %1091 = vmatprep.subr.mxu0 %v678
    %1092 = vmatpush1.msra.mxu0 %v677
    %1093 = vmatprep.subr.mxu0 %v682
    %1094 = vmatpush1.msra.mxu0 %v681
    %1095 = vmatprep.subr.mxu0 %v686
    %1096 = vmatpush1.msra.mxu0 %v685
    %1097 = vmatprep.subr.mxu0 %v690
    %1098 = vmatpush1.msra.mxu0 %v689
    %1099 = vmatprep.subr.mxu0 %v694
    %1100 = vmatpush1.msra.mxu0 %v693
    %1101 = vmatprep.subr.mxu0 %v698
    %1102 = vmatpush1.msra.mxu0 %v697
    %1103 = vmatprep.subr.mxu0 %v702
    %1104 = vmatpush1.msra.mxu0 %v701
    %1105 = vmatprep.subr.mxu0 %v706
    %1106 = vmatpush1.msra.mxu0 %v705
    %1107 = vmatprep.subr.mxu0 %v710
    %1108 = vmatpush1.msra.mxu0 %v709
    %1109 = vmatprep.subr.mxu0 %v714
    %1110 = vmatpush1.msra.mxu0 %v713
    %1111 = vmatprep.subr.mxu0 %v718
    %1112 = vmatpush1.msra.mxu0 %v717
    %1113 = vmatprep.subr.mxu0 %v722
    %1114 = vmatpush1.msra.mxu0 %v721
    %1115 = vmatprep.subr.mxu0 %v726
    %1116 = vmatpush1.msra.mxu0 %v725
    %1117 = vmatprep.subr.mxu0 %v730
    %1118 = vmatpush1.msra.mxu0 %v729
    %1119 = vmatprep.subr.mxu0 %v734
    %1120 = vmatpush1.msra.mxu0 %v733
    %1121 = vmatprep.subr.mxu0 %v738
    %1122 = vmatpush1.msra.mxu0 %v737
    %1123 = vmatprep.subr.mxu0 %v742
    %1124 = vmatpush1.msra.mxu0 %v741
    %1125 = vmatprep.subr.mxu0 %v746
    %1126 = vmatpush1.msra.mxu0 %v745
    %1127 = vmatprep.subr.mxu0 %v750
    %1128 = vmatpush1.msra.mxu0 %v749
    %1129 = vmatprep.subr.mxu0 %v754
    %1130 = vmatpush1.msra.mxu0 %v753
    %1131 = vmatprep.subr.mxu0 %v758
    %1132 = vmatpush1.msra.mxu0 %v757
    %1133 = vmatprep.subr.mxu0 %v762
    %1134 = vmatpush1.msra.mxu0 %v761
    %1135 = vmatprep.mubr.f32.mxu0 %v124
    %1136 = vmatmul.mubr.f32.gmra.mrb[0].mxu0 %v123
    %v1137 = vpop.f32.mrb[0].mxu0
    %v1138 = vadd.f32 %v1067, %v1137
    %v1139 = vpop.f32.mrb[0].mxu0
    %v1140 = vadd.f32 %v1069, %v1139
    %1141 = vdwg.mxu0
    %1142 = vmatprep.subr.mxu0 %v128
    %1143 = vmatpush1.msra.mxu0 %v127
    %1144 = vmatprep.subr.mxu0 %v132
    %1145 = vmatpush1.msra.mxu0 %v131
    %1146 = vmatprep.subr.mxu0 %v136
    %1147 = vmatpush1.msra.mxu0 %v135
    %1148 = vmatprep.subr.mxu0 %v140
    %1149 = vmatpush1.msra.mxu0 %v139
    %1150 = vmatprep.subr.mxu0 %v144
    %1151 = vmatpush1.msra.mxu0 %v143
    %1152 = vmatprep.subr.mxu0 %v148
    %1153 = vmatpush1.msra.mxu0 %v147
    %1154 = vmatprep.subr.mxu0 %v152
    %1155 = vmatpush1.msra.mxu0 %v151
    %1156 = vmatprep.subr.mxu0 %v156
    %1157 = vmatpush1.msra.mxu0 %v155
    %1158 = vmatprep.subr.mxu0 %v160
    %1159 = vmatpush1.msra.mxu0 %v159
    %1160 = vmatprep.subr.mxu0 %v164
    %1161 = vmatpush1.msra.mxu0 %v163
    %1162 = vmatprep.subr.mxu0 %v168
    %1163 = vmatpush1.msra.mxu0 %v167
    %1164 = vmatprep.subr.mxu0 %v172
    %1165 = vmatpush1.msra.mxu0 %v171
    %1166 = vmatprep.subr.mxu0 %v176
    %1167 = vmatpush1.msra.mxu0 %v175
    %1168 = vmatprep.subr.mxu0 %v180
    %1169 = vmatpush1.msra.mxu0 %v179
    %1170 = vmatprep.subr.mxu0 %v184
    %1171 = vmatpush1.msra.mxu0 %v183
    %1172 = vmatprep.subr.mxu0 %v188
    %1173 = vmatpush1.msra.mxu0 %v187
    %1174 = vmatprep.subr.mxu0 %v192
    %1175 = vmatpush1.msra.mxu0 %v191
    %1176 = vmatprep.subr.mxu0 %v196
    %1177 = vmatpush1.msra.mxu0 %v195
    %1178 = vmatprep.subr.mxu0 %v200
    %1179 = vmatpush1.msra.mxu0 %v199
    %1180 = vmatprep.subr.mxu0 %v204
    %1181 = vmatpush1.msra.mxu0 %v203
    %1182 = vmatprep.subr.mxu0 %v208
    %1183 = vmatpush1.msra.mxu0 %v207
    %1184 = vmatprep.subr.mxu0 %v212
    %1185 = vmatpush1.msra.mxu0 %v211
    %1186 = vmatprep.subr.mxu0 %v216
    %1187 = vmatpush1.msra.mxu0 %v215
    %1188 = vmatprep.subr.mxu0 %v220
    %1189 = vmatpush1.msra.mxu0 %v219
    %1190 = vmatprep.subr.mxu0 %v224
    %1191 = vmatpush1.msra.mxu0 %v223
    %1192 = vmatprep.subr.mxu0 %v228
    %1193 = vmatpush1.msra.mxu0 %v227
    %1194 = vmatprep.subr.mxu0 %v232
    %1195 = vmatpush1.msra.mxu0 %v231
    %1196 = vmatprep.subr.mxu0 %v236
    %1197 = vmatpush1.msra.mxu0 %v235
    %1198 = vmatprep.subr.mxu0 %v240
    %1199 = vmatpush1.msra.mxu0 %v239
    %1200 = vmatprep.subr.mxu0 %v244
    %1201 = vmatpush1.msra.mxu0 %v243
    %1202 = vmatprep.subr.mxu0 %v248
    %1203 = vmatpush1.msra.mxu0 %v247
    %1204 = vmatprep.subr.mxu0 %v252
    %1205 = vmatpush1.msra.mxu0 %v251
    %1206 = vmatprep.mubr.f32.mxu0 %v116
    %1207 = vmatmul.mubr.f32.gmra.mrb[0].mxu0 %v115
    %v1208 = vpop.f32.mrb[0].mxu0
    %v1209 = vadd.f32 %v778, %v1208
    %v1210 = vpop.f32.mrb[0].mxu0
    %v1211 = vadd.f32 %v782, %v1210
    %1212 = vdwg.mxu0
    %1213 = vmatprep.subr.mxu0 %v256
    %1214 = vmatpush1.msra.mxu0 %v255
    %1215 = vmatprep.subr.mxu0 %v260
    %1216 = vmatpush1.msra.mxu0 %v259
    %1217 = vmatprep.subr.mxu0 %v264
    %1218 = vmatpush1.msra.mxu0 %v263
    %1219 = vmatprep.subr.mxu0 %v268
    %1220 = vmatpush1.msra.mxu0 %v267
    %1221 = vmatprep.subr.mxu0 %v272
    %1222 = vmatpush1.msra.mxu0 %v271
    %1223 = vmatprep.subr.mxu0 %v276
    %1224 = vmatpush1.msra.mxu0 %v275
    %1225 = vmatprep.subr.mxu0 %v280
    %1226 = vmatpush1.msra.mxu0 %v279
    %1227 = vmatprep.subr.mxu0 %v284
    %1228 = vmatpush1.msra.mxu0 %v283
    %1229 = vmatprep.subr.mxu0 %v288
    %1230 = vmatpush1.msra.mxu0 %v287
    %1231 = vmatprep.subr.mxu0 %v292
    %1232 = vmatpush1.msra.mxu0 %v291
    %1233 = vmatprep.subr.mxu0 %v296
    %1234 = vmatpush1.msra.mxu0 %v295
    %1235 = vmatprep.subr.mxu0 %v300
    %1236 = vmatpush1.msra.mxu0 %v299
    %1237 = vmatprep.subr.mxu0 %v304
    %1238 = vmatpush1.msra.mxu0 %v303
    %1239 = vmatprep.subr.mxu0 %v308
    %1240 = vmatpush1.msra.mxu0 %v307
    %1241 = vmatprep.subr.mxu0 %v312
    %1242 = vmatpush1.msra.mxu0 %v311
    %1243 = vmatprep.subr.mxu0 %v316
    %1244 = vmatpush1.msra.mxu0 %v315
    %1245 = vmatprep.subr.mxu0 %v320
    %1246 = vmatpush1.msra.mxu0 %v319
    %1247 = vmatprep.subr.mxu0 %v324
    %1248 = vmatpush1.msra.mxu0 %v323
    %1249 = vmatprep.subr.mxu0 %v328
    %1250 = vmatpush1.msra.mxu0 %v327
    %1251 = vmatprep.subr.mxu0 %v332
    %1252 = vmatpush1.msra.mxu0 %v331
    %1253 = vmatprep.subr.mxu0 %v336
    %1254 = vmatpush1.msra.mxu0 %v335
    %1255 = vmatprep.subr.mxu0 %v340
    %1256 = vmatpush1.msra.mxu0 %v339
    %1257 = vmatprep.subr.mxu0 %v344
    %1258 = vmatpush1.msra.mxu0 %v343
    %1259 = vmatprep.subr.mxu0 %v348
    %1260 = vmatpush1.msra.mxu0 %v347
    %1261 = vmatprep.subr.mxu0 %v352
    %1262 = vmatpush1.msra.mxu0 %v351
    %1263 = vmatprep.subr.mxu0 %v356
    %1264 = vmatpush1.msra.mxu0 %v355
    %1265 = vmatprep.subr.mxu0 %v360
    %1266 = vmatpush1.msra.mxu0 %v359
    %1267 = vmatprep.subr.mxu0 %v364
    %1268 = vmatpush1.msra.mxu0 %v363
    %1269 = vmatprep.subr.mxu0 %v368
    %1270 = vmatpush1.msra.mxu0 %v367
    %1271 = vmatprep.subr.mxu0 %v372
    %1272 = vmatpush1.msra.mxu0 %v371
    %1273 = vmatprep.subr.mxu0 %v376
    %1274 = vmatpush1.msra.mxu0 %v375
    %1275 = vmatprep.subr.mxu0 %v380
    %1276 = vmatpush1.msra.mxu0 %v379
    %1277 = vmatprep.mubr.f32.mxu0 %v118
    %1278 = vmatmul.mubr.f32.gmra.mrb[0].mxu0 %v117
    %v1279 = vpop.f32.mrb[0].mxu0
    %v1280 = vadd.f32 %v1209, %v1279
    %v1281 = vpop.f32.mrb[0].mxu0
    %v1282 = vadd.f32 %v1211, %v1281
    %1283 = vdwg.mxu0
    %1284 = vmatprep.subr.mxu0 %v384
    %1285 = vmatpush1.msra.mxu0 %v383
    %1286 = vmatprep.subr.mxu0 %v388
    %1287 = vmatpush1.msra.mxu0 %v387
    %1288 = vmatprep.subr.mxu0 %v392
    %1289 = vmatpush1.msra.mxu0 %v391
    %1290 = vmatprep.subr.mxu0 %v396
    %1291 = vmatpush1.msra.mxu0 %v395
    %1292 = vmatprep.subr.mxu0 %v400
    %1293 = vmatpush1.msra.mxu0 %v399
    %1294 = vmatprep.subr.mxu0 %v404
    %1295 = vmatpush1.msra.mxu0 %v403
    %1296 = vmatprep.subr.mxu0 %v408
    %1297 = vmatpush1.msra.mxu0 %v407
    %1298 = vmatprep.subr.mxu0 %v412
    %1299 = vmatpush1.msra.mxu0 %v411
    %1300 = vmatprep.subr.mxu0 %v416
    %1301 = vmatpush1.msra.mxu0 %v415
    %1302 = vmatprep.subr.mxu0 %v420
    %1303 = vmatpush1.msra.mxu0 %v419
    %1304 = vmatprep.subr.mxu0 %v424
    %1305 = vmatpush1.msra.mxu0 %v423
    %1306 = vmatprep.subr.mxu0 %v428
    %1307 = vmatpush1.msra.mxu0 %v427
    %1308 = vmatprep.subr.mxu0 %v432
    %1309 = vmatpush1.msra.mxu0 %v431
    %1310 = vmatprep.subr.mxu0 %v436
    %1311 = vmatpush1.msra.mxu0 %v435
    %1312 = vmatprep.subr.mxu0 %v440
    %1313 = vmatpush1.msra.mxu0 %v439
    %1314 = vmatprep.subr.mxu0 %v444
    %1315 = vmatpush1.msra.mxu0 %v443
    %1316 = vmatprep.subr.mxu0 %v448
    %1317 = vmatpush1.msra.mxu0 %v447
    %1318 = vmatprep.subr.mxu0 %v452
    %1319 = vmatpush1.msra.mxu0 %v451
    %1320 = vmatprep.subr.mxu0 %v456
    %1321 = vmatpush1.msra.mxu0 %v455
    %1322 = vmatprep.subr.mxu0 %v460
    %1323 = vmatpush1.msra.mxu0 %v459
    %1324 = vmatprep.subr.mxu0 %v464
    %1325 = vmatpush1.msra.mxu0 %v463
    %1326 = vmatprep.subr.mxu0 %v468
    %1327 = vmatpush1.msra.mxu0 %v467
    %1328 = vmatprep.subr.mxu0 %v472
    %1329 = vmatpush1.msra.mxu0 %v471
    %1330 = vmatprep.subr.mxu0 %v476
    %1331 = vmatpush1.msra.mxu0 %v475
    %1332 = vmatprep.subr.mxu0 %v480
    %1333 = vmatpush1.msra.mxu0 %v479
    %1334 = vmatprep.subr.mxu0 %v484
    %1335 = vmatpush1.msra.mxu0 %v483
    %1336 = vmatprep.subr.mxu0 %v488
    %1337 = vmatpush1.msra.mxu0 %v487
    %1338 = vmatprep.subr.mxu0 %v492
    %1339 = vmatpush1.msra.mxu0 %v491
    %1340 = vmatprep.subr.mxu0 %v496
    %1341 = vmatpush1.msra.mxu0 %v495
    %1342 = vmatprep.subr.mxu0 %v500
    %1343 = vmatpush1.msra.mxu0 %v499
    %1344 = vmatprep.subr.mxu0 %v504
    %1345 = vmatpush1.msra.mxu0 %v503
    %1346 = vmatprep.subr.mxu0 %v508
    %1347 = vmatpush1.msra.mxu0 %v507
    %1348 = vmatprep.mubr.f32.mxu0 %v120
    %1349 = vmatmul.mubr.f32.gmra.mrb[0].mxu0 %v119
    %v1350 = vpop.f32.mrb[0].mxu0
    %v1351 = vadd.f32 %v1280, %v1350
    %v1352 = vpop.f32.mrb[0].mxu0
    %v1353 = vadd.f32 %v1282, %v1352
    %1354 = vdwg.mxu0
    %1355 = vmatprep.subr.mxu0 %v512
    %1356 = vmatpush1.msra.mxu0 %v511
    %1357 = vmatprep.subr.mxu0 %v516
    %1358 = vmatpush1.msra.mxu0 %v515
    %1359 = vmatprep.subr.mxu0 %v520
    %1360 = vmatpush1.msra.mxu0 %v519
    %1361 = vmatprep.subr.mxu0 %v524
    %1362 = vmatpush1.msra.mxu0 %v523
    %1363 = vmatprep.subr.mxu0 %v528
    %1364 = vmatpush1.msra.mxu0 %v527
    %1365 = vmatprep.subr.mxu0 %v532
    %1366 = vmatpush1.msra.mxu0 %v531
    %1367 = vmatprep.subr.mxu0 %v536
    %1368 = vmatpush1.msra.mxu0 %v535
    %1369 = vmatprep.subr.mxu0 %v540
    %1370 = vmatpush1.msra.mxu0 %v539
    %1371 = vmatprep.subr.mxu0 %v544
    %1372 = vmatpush1.msra.mxu0 %v543
    %1373 = vmatprep.subr.mxu0 %v548
    %1374 = vmatpush1.msra.mxu0 %v547
    %1375 = vmatprep.subr.mxu0 %v552
    %1376 = vmatpush1.msra.mxu0 %v551
    %1377 = vmatprep.subr.mxu0 %v556
    %1378 = vmatpush1.msra.mxu0 %v555
    %1379 = vmatprep.subr.mxu0 %v560
    %1380 = vmatpush1.msra.mxu0 %v559
    %1381 = vmatprep.subr.mxu0 %v564
    %1382 = vmatpush1.msra.mxu0 %v563
    %1383 = vmatprep.subr.mxu0 %v568
    %1384 = vmatpush1.msra.mxu0 %v567
    %1385 = vmatprep.subr.mxu0 %v572
    %1386 = vmatpush1.msra.mxu0 %v571
    %1387 = vmatprep.subr.mxu0 %v576
    %1388 = vmatpush1.msra.mxu0 %v575
    %1389 = vmatprep.subr.mxu0 %v580
    %1390 = vmatpush1.msra.mxu0 %v579
    %1391 = vmatprep.subr.mxu0 %v584
    %1392 = vmatpush1.msra.mxu0 %v583
    %1393 = vmatprep.subr.mxu0 %v588
    %1394 = vmatpush1.msra.mxu0 %v587
    %1395 = vmatprep.subr.mxu0 %v592
    %1396 = vmatpush1.msra.mxu0 %v591
    %1397 = vmatprep.subr.mxu0 %v596
    %1398 = vmatpush1.msra.mxu0 %v595
    %1399 = vmatprep.subr.mxu0 %v600
    %1400 = vmatpush1.msra.mxu0 %v599
    %1401 = vmatprep.subr.mxu0 %v604
    %1402 = vmatpush1.msra.mxu0 %v603
    %1403 = vmatprep.subr.mxu0 %v608
    %1404 = vmatpush1.msra.mxu0 %v607
    %1405 = vmatprep.subr.mxu0 %v612
    %1406 = vmatpush1.msra.mxu0 %v611
    %1407 = vmatprep.subr.mxu0 %v616
    %1408 = vmatpush1.msra.mxu0 %v615
    %1409 = vmatprep.subr.mxu0 %v620
    %1410 = vmatpush1.msra.mxu0 %v619
    %1411 = vmatprep.subr.mxu0 %v624
    %1412 = vmatpush1.msra.mxu0 %v623
    %1413 = vmatprep.subr.mxu0 %v628
    %1414 = vmatpush1.msra.mxu0 %v627
    %1415 = vmatprep.subr.mxu0 %v632
    %1416 = vmatpush1.msra.mxu0 %v631
    %1417 = vmatprep.subr.mxu0 %v636
    %1418 = vmatpush1.msra.mxu0 %v635
    %1419 = vmatprep.mubr.f32.mxu0 %v122
    %1420 = vmatmul.mubr.f32.gmra.mrb[0].mxu0 %v121
    %v1421 = vpop.f32.mrb[0].mxu0
    %v1422 = vadd.f32 %v1351, %v1421
    %v1423 = vpop.f32.mrb[0].mxu0
    %v1424 = vadd.f32 %v1353, %v1423
    %1425 = vdwg.mxu0
    %1426 = vmatprep.subr.mxu0 %v640
    %1427 = vmatpush1.msra.mxu0 %v639
    %1428 = vmatprep.subr.mxu0 %v644
    %1429 = vmatpush1.msra.mxu0 %v643
    %1430 = vmatprep.subr.mxu0 %v648
    %1431 = vmatpush1.msra.mxu0 %v647
    %1432 = vmatprep.subr.mxu0 %v652
    %1433 = vmatpush1.msra.mxu0 %v651
    %1434 = vmatprep.subr.mxu0 %v656
    %1435 = vmatpush1.msra.mxu0 %v655
    %1436 = vmatprep.subr.mxu0 %v660
    %1437 = vmatpush1.msra.mxu0 %v659
    %1438 = vmatprep.subr.mxu0 %v664
    %1439 = vmatpush1.msra.mxu0 %v663
    %1440 = vmatprep.subr.mxu0 %v668
    %1441 = vmatpush1.msra.mxu0 %v667
    %1442 = vmatprep.subr.mxu0 %v672
    %1443 = vmatpush1.msra.mxu0 %v671
    %1444 = vmatprep.subr.mxu0 %v676
    %1445 = vmatpush1.msra.mxu0 %v675
    %1446 = vmatprep.subr.mxu0 %v680
    %1447 = vmatpush1.msra.mxu0 %v679
    %1448 = vmatprep.subr.mxu0 %v684
    %1449 = vmatpush1.msra.mxu0 %v683
    %1450 = vmatprep.subr.mxu0 %v688
    %1451 = vmatpush1.msra.mxu0 %v687
    %1452 = vmatprep.subr.mxu0 %v692
    %1453 = vmatpush1.msra.mxu0 %v691
    %1454 = vmatprep.subr.mxu0 %v696
    %1455 = vmatpush1.msra.mxu0 %v695
    %1456 = vmatprep.subr.mxu0 %v700
    %1457 = vmatpush1.msra.mxu0 %v699
    %1458 = vmatprep.subr.mxu0 %v704
    %1459 = vmatpush1.msra.mxu0 %v703
    %1460 = vmatprep.subr.mxu0 %v708
    %1461 = vmatpush1.msra.mxu0 %v707
    %1462 = vmatprep.subr.mxu0 %v712
    %1463 = vmatpush1.msra.mxu0 %v711
    %1464 = vmatprep.subr.mxu0 %v716
    %1465 = vmatpush1.msra.mxu0 %v715
    %1466 = vmatprep.subr.mxu0 %v720
    %1467 = vmatpush1.msra.mxu0 %v719
    %1468 = vmatprep.subr.mxu0 %v724
    %1469 = vmatpush1.msra.mxu0 %v723
    %1470 = vmatprep.subr.mxu0 %v728
    %1471 = vmatpush1.msra.mxu0 %v727
    %1472 = vmatprep.subr.mxu0 %v732
    %1473 = vmatpush1.msra.mxu0 %v731
    %1474 = vmatprep.subr.mxu0 %v736
    %1475 = vmatpush1.msra.mxu0 %v735
    %1476 = vmatprep.subr.mxu0 %v740
    %1477 = vmatpush1.msra.mxu0 %v739
    %1478 = vmatprep.subr.mxu0 %v744
    %1479 = vmatpush1.msra.mxu0 %v743
    %1480 = vmatprep.subr.mxu0 %v748
    %1481 = vmatpush1.msra.mxu0 %v747
    %1482 = vmatprep.subr.mxu0 %v752
    %1483 = vmatpush1.msra.mxu0 %v751
    %1484 = vmatprep.subr.mxu0 %v756
    %1485 = vmatpush1.msra.mxu0 %v755
    %1486 = vmatprep.subr.mxu0 %v760
    %1487 = vmatpush1.msra.mxu0 %v759
    %1488 = vmatprep.subr.mxu0 %v764
    %1489 = vmatpush1.msra.mxu0 %v763
    %1490 = vmatprep.mubr.f32.mxu0 %v124
    %1491 = vmatmul.mubr.f32.gmra.mrb[0].mxu0 %v123
    %v1492 = vpop.f32.mrb[0].mxu0
    %v1493 = vadd.f32 %v1422, %v1492
    %v1494 = vpop.f32.mrb[0].mxu0
    %v1495 = vadd.f32 %v1424, %v1494
    %1496 = vdwg.mxu0
    %v1497 = vld [vmem:[#allocation5] sm:$0xff]
    %v1498 = vld [vmem:[#allocation5 + $0x8] sm:$0xff]
    %v1499 = vld [vmem:[#allocation5 + $0x10] sm:$0xff]
    %v1500 = vld [vmem:[#allocation5 + $0x18] sm:$0xff]
    %vm1501 = vcmp.ge.u32.totalorder %v1497, 858993459
    %vm1502 = vcmp.ge.u32.totalorder %v1498, 858993459
    %vm1503 = vcmp.ge.u32.totalorder %v1499, 858993459
    %vm1504 = vcmp.ge.u32.totalorder %v1500, 858993459
    %v1505 = vmul.f32 %v1138, 1.25
    %v1506 = vmul.f32 %v1140, 1.25
    %v1507 = vmul.f32 %v1493, 1.25
    %v1508 = vmul.f32 %v1495, 1.25
    %v1509 = vsel %vm1501, %v1505, 0.0
    %v1510 = vsel %vm1502, %v1506, 0.0
    %v1511 = vsel %vm1503, %v1507, 0.0
    %v1512 = vsel %vm1504, %v1508, 0.0
    %v1513 = vadd.f32 %v1509, %v1510
    %v1514 = vadd.f32 %v1513, %v1511
    %v1515 = vadd.f32 %v1514, %v1512
    %1516 = vadd.xlane.f32.xlu0 %v1515
    %v1517 = vpop.xlane.xlu0 %1516
    %v1518 = vrcp.pop 512.0
    %v1519 = vmul.f32 %v1517, %v1518
    %v1520 = vsub.f32 %v1509, %v1519
    %v1521 = vsub.f32 %v1510, %v1519
    %v1522 = vsub.f32 %v1511, %v1519
    %v1523 = vsub.f32 %v1512, %v1519
    %v1524 = vmul.f32 %v1520, %v1520
    %v1525 = vmul.f32 %v1521, %v1521
    %v1526 = vmul.f32 %v1522, %v1522
    %v1527 = vmul.f32 %v1523, %v1523
    %v1528 = vadd.f32 %v1524, %v1525
    %v1529 = vadd.f32 %v1528, %v1526
    %v1530 = vadd.f32 %v1529, %v1527
    %1531 = vadd.xlane.f32.xlu0 %v1530
    %v1532 = vpop.xlane.xlu0 %1531
    %v1533 = vmul.f32 %v1532, %v1518
    %v1534 = vadd.f32 %v1533, 1e-05
    %v1535 = vrsqrt.pop %v1534
    %v1536 = vmul.f32 %v1520, %v1535
    %v1537 = vmul.f32 %v1521, %v1535
    %v1538 = vmul.f32 %v1522, %v1535
    %v1539 = vmul.f32 %v1523, %v1535
    %v1540 = vld [vmem:[#allocation10] sm:$0xf]
    %v1542 = vlaneseq
    %v1543 = vshrl.u32 %v1542, 7
    %v1544 = vsub.s32 0, %v1543
    %v1545 = vrot.slane %v1540, %v1544
    %v1546 = vlaneseq
    %v1547 = vshrl.u32 %v1546, 7
    %v1548 = vsub.s32 1, %v1547
    %v1549 = vrot.slane %v1540, %v1548
    %v1550 = vlaneseq
    %v1551 = vshrl.u32 %v1550, 7
    %v1552 = vsub.s32 2, %v1551
    %v1553 = vrot.slane %v1540, %v1552
    %v1554 = vlaneseq
    %v1555 = vshrl.u32 %v1554, 7
    %v1556 = vsub.s32 3, %v1555
    %v1557 = vrot.slane %v1540, %v1556
    %v1562 = vmul.f32 %v1536, %v1545
    %v1563 = vmul.f32 %v1537, %v1549
    %v1564 = vmul.f32 %v1538, %v1553
    %v1565 = vmul.f32 %v1539, %v1557
    %v1566 = vld [vmem:[#allocation11] sm:$0xf]
    %v1568 = vlaneseq
    %v1569 = vshrl.u32 %v1568, 7
    %v1570 = vsub.s32 0, %v1569
    %v1571 = vrot.slane %v1566, %v1570
    %v1572 = vlaneseq
    %v1573 = vshrl.u32 %v1572, 7
    %v1574 = vsub.s32 1, %v1573
    %v1575 = vrot.slane %v1566, %v1574
    %v1576 = vlaneseq
    %v1577 = vshrl.u32 %v1576, 7
    %v1578 = vsub.s32 2, %v1577
    %v1579 = vrot.slane %v1566, %v1578
    %v1580 = vlaneseq
    %v1581 = vshrl.u32 %v1580, 7
    %v1582 = vsub.s32 3, %v1581
    %v1583 = vrot.slane %v1566, %v1582
    %v1588 = vadd.f32 %v1562, %v1571
    %v1589 = vadd.f32 %v1563, %v1575
    %v1590 = vadd.f32 %v1564, %v1579
    %v1591 = vadd.f32 %v1565, %v1583
    %v1592 = vtanh.pop %v1588
    %v1593 = vtanh.pop %v1589
    %v1594 = vtanh.pop %v1590
    %v1595 = vtanh.pop %v1591
    %1596 = vst [vmem:[#allocation14] sm:$0xff] %v1592
    %1597 = vst [vmem:[#allocation14 + $0x8] sm:$0xff] %v1593
    %1598 = vst [vmem:[#allocation14 + $0x10] sm:$0xff] %v1594
    %1599 = vst [vmem:[#allocation14 + $0x18] sm:$0xff] %v1595
    %v1600 = vld [vmem:[#allocation13] sm:$0xff]
    %v1601 = vld [vmem:[#allocation13 + $0x8] sm:$0xff]
    %v1602 = vld [vmem:[#allocation13 + $0x10] sm:$0xff]
    %v1603 = vld [vmem:[#allocation13 + $0x18] sm:$0xff]
    %v1604 = vld [vmem:[#allocation13 + $0x20] sm:$0xff]
    %v1605 = vld [vmem:[#allocation13 + $0x28] sm:$0xff]
    %v1606 = vld [vmem:[#allocation13 + $0x30] sm:$0xff]
    %v1607 = vld [vmem:[#allocation13 + $0x38] sm:$0xff]
    %v1608 = vld [vmem:[#allocation13 + $0x40] sm:$0xff]
    %v1609 = vld [vmem:[#allocation13 + $0x48] sm:$0xff]
    %v1610 = vld [vmem:[#allocation13 + $0x50] sm:$0xff]
    %v1611 = vld [vmem:[#allocation13 + $0x58] sm:$0xff]
    %v1612 = vld [vmem:[#allocation13 + $0x60] sm:$0xff]
    %v1613 = vld [vmem:[#allocation13 + $0x68] sm:$0xff]
    %v1614 = vld [vmem:[#allocation13 + $0x70] sm:$0xff]
    %v1615 = vld [vmem:[#allocation13 + $0x78] sm:$0xff]
    %v1616 = vld [vmem:[#allocation13 + $0x80] sm:$0xff]
    %v1617 = vld [vmem:[#allocation13 + $0x88] sm:$0xff]
    %v1618 = vld [vmem:[#allocation13 + $0x90] sm:$0xff]
    %v1619 = vld [vmem:[#allocation13 + $0x98] sm:$0xff]
    %v1620 = vld [vmem:[#allocation13 + $0xa0] sm:$0xff]
    %v1621 = vld [vmem:[#allocation13 + $0xa8] sm:$0xff]
    %v1622 = vld [vmem:[#allocation13 + $0xb0] sm:$0xff]
    %v1623 = vld [vmem:[#allocation13 + $0xb8] sm:$0xff]
    %v1624 = vld [vmem:[#allocation13 + $0xc0] sm:$0xff]
    %v1625 = vld [vmem:[#allocation13 + $0xc8] sm:$0xff]
    %v1626 = vld [vmem:[#allocation13 + $0xd0] sm:$0xff]
    %v1627 = vld [vmem:[#allocation13 + $0xd8] sm:$0xff]
    %v1628 = vld [vmem:[#allocation13 + $0xe0] sm:$0xff]
    %v1629 = vld [vmem:[#allocation13 + $0xe8] sm:$0xff]
    %v1630 = vld [vmem:[#allocation13 + $0xf0] sm:$0xff]
    %v1631 = vld [vmem:[#allocation13 + $0xf8] sm:$0xff]
    %v1632 = vld [vmem:[#allocation13 + $0x100] sm:$0xff]
    %v1633 = vld [vmem:[#allocation13 + $0x108] sm:$0xff]
    %v1634 = vld [vmem:[#allocation13 + $0x110] sm:$0xff]
    %v1635 = vld [vmem:[#allocation13 + $0x118] sm:$0xff]
    %v1636 = vld [vmem:[#allocation13 + $0x120] sm:$0xff]
    %v1637 = vld [vmem:[#allocation13 + $0x128] sm:$0xff]
    %v1638 = vld [vmem:[#allocation13 + $0x130] sm:$0xff]
    %v1639 = vld [vmem:[#allocation13 + $0x138] sm:$0xff]
    %v1640 = vld [vmem:[#allocation13 + $0x140] sm:$0xff]
    %v1641 = vld [vmem:[#allocation13 + $0x148] sm:$0xff]
    %v1642 = vld [vmem:[#allocation13 + $0x150] sm:$0xff]
    %v1643 = vld [vmem:[#allocation13 + $0x158] sm:$0xff]
    %v1644 = vld [vmem:[#allocation13 + $0x160] sm:$0xff]
    %v1645 = vld [vmem:[#allocation13 + $0x168] sm:$0xff]
    %v1646 = vld [vmem:[#allocation13 + $0x170] sm:$0xff]
    %v1647 = vld [vmem:[#allocation13 + $0x178] sm:$0xff]
    %v1648 = vld [vmem:[#allocation13 + $0x180] sm:$0xff]
    %v1649 = vld [vmem:[#allocation13 + $0x188] sm:$0xff]
    %v1650 = vld [vmem:[#allocation13 + $0x190] sm:$0xff]
    %v1651 = vld [vmem:[#allocation13 + $0x198] sm:$0xff]
    %v1652 = vld [vmem:[#allocation13 + $0x1a0] sm:$0xff]
    %v1653 = vld [vmem:[#allocation13 + $0x1a8] sm:$0xff]
    %v1654 = vld [vmem:[#allocation13 + $0x1b0] sm:$0xff]
    %v1655 = vld [vmem:[#allocation13 + $0x1b8] sm:$0xff]
    %v1656 = vld [vmem:[#allocation13 + $0x1c0] sm:$0xff]
    %v1657 = vld [vmem:[#allocation13 + $0x1c8] sm:$0xff]
    %v1658 = vld [vmem:[#allocation13 + $0x1d0] sm:$0xff]
    %v1659 = vld [vmem:[#allocation13 + $0x1d8] sm:$0xff]
    %v1660 = vld [vmem:[#allocation13 + $0x1e0] sm:$0xff]
    %v1661 = vld [vmem:[#allocation13 + $0x1e8] sm:$0xff]
    %v1662 = vld [vmem:[#allocation13 + $0x1f0] sm:$0xff]
    %v1663 = vld [vmem:[#allocation13 + $0x1f8] sm:$0xff]
    %v1664 = vld [vmem:[#allocation13 + $0x200] sm:$0xff]
    %v1665 = vld [vmem:[#allocation13 + $0x208] sm:$0xff]
    %v1666 = vld [vmem:[#allocation13 + $0x210] sm:$0xff]
    %v1667 = vld [vmem:[#allocation13 + $0x218] sm:$0xff]
    %v1668 = vld [vmem:[#allocation13 + $0x220] sm:$0xff]
    %v1669 = vld [vmem:[#allocation13 + $0x228] sm:$0xff]
    %v1670 = vld [vmem:[#allocation13 + $0x230] sm:$0xff]
    %v1671 = vld [vmem:[#allocation13 + $0x238] sm:$0xff]
    %v1672 = vld [vmem:[#allocation13 + $0x240] sm:$0xff]
    %v1673 = vld [vmem:[#allocation13 + $0x248] sm:$0xff]
    %v1674 = vld [vmem:[#allocation13 + $0x250] sm:$0xff]
    %v1675 = vld [vmem:[#allocation13 + $0x258] sm:$0xff]
    %v1676 = vld [vmem:[#allocation13 + $0x260] sm:$0xff]
    %v1677 = vld [vmem:[#allocation13 + $0x268] sm:$0xff]
    %v1678 = vld [vmem:[#allocation13 + $0x270] sm:$0xff]
    %v1679 = vld [vmem:[#allocation13 + $0x278] sm:$0xff]
    %v1680 = vld [vmem:[#allocation13 + $0x280] sm:$0xff]
    %v1681 = vld [vmem:[#allocation13 + $0x288] sm:$0xff]
    %v1682 = vld [vmem:[#allocation13 + $0x290] sm:$0xff]
    %v1683 = vld [vmem:[#allocation13 + $0x298] sm:$0xff]
    %v1684 = vld [vmem:[#allocation13 + $0x2a0] sm:$0xff]
    %v1685 = vld [vmem:[#allocation13 + $0x2a8] sm:$0xff]
    %v1686 = vld [vmem:[#allocation13 + $0x2b0] sm:$0xff]
    %v1687 = vld [vmem:[#allocation13 + $0x2b8] sm:$0xff]
    %v1688 = vld [vmem:[#allocation13 + $0x2c0] sm:$0xff]
    %v1689 = vld [vmem:[#allocation13 + $0x2c8] sm:$0xff]
    %v1690 = vld [vmem:[#allocation13 + $0x2d0] sm:$0xff]
    %v1691 = vld [vmem:[#allocation13 + $0x2d8] sm:$0xff]
    %v1692 = vld [vmem:[#allocation13 + $0x2e0] sm:$0xff]
    %v1693 = vld [vmem:[#allocation13 + $0x2e8] sm:$0xff]
    %v1694 = vld [vmem:[#allocation13 + $0x2f0] sm:$0xff]
    %v1695 = vld [vmem:[#allocation13 + $0x2f8] sm:$0xff]
    %v1696 = vld [vmem:[#allocation13 + $0x300] sm:$0xff]
    %v1697 = vld [vmem:[#allocation13 + $0x308] sm:$0xff]
    %v1698 = vld [vmem:[#allocation13 + $0x310] sm:$0xff]
    %v1699 = vld [vmem:[#allocation13 + $0x318] sm:$0xff]
    %v1700 = vld [vmem:[#allocation13 + $0x320] sm:$0xff]
    %v1701 = vld [vmem:[#allocation13 + $0x328] sm:$0xff]
    %v1702 = vld [vmem:[#allocation13 + $0x330] sm:$0xff]
    %v1703 = vld [vmem:[#allocation13 + $0x338] sm:$0xff]
    %v1704 = vld [vmem:[#allocation13 + $0x340] sm:$0xff]
    %v1705 = vld [vmem:[#allocation13 + $0x348] sm:$0xff]
    %v1706 = vld [vmem:[#allocation13 + $0x350] sm:$0xff]
    %v1707 = vld [vmem:[#allocation13 + $0x358] sm:$0xff]
    %v1708 = vld [vmem:[#allocation13 + $0x360] sm:$0xff]
    %v1709 = vld [vmem:[#allocation13 + $0x368] sm:$0xff]
    %v1710 = vld [vmem:[#allocation13 + $0x370] sm:$0xff]
    %v1711 = vld [vmem:[#allocation13 + $0x378] sm:$0xff]
    %v1712 = vld [vmem:[#allocation13 + $0x380] sm:$0xff]
    %v1713 = vld [vmem:[#allocation13 + $0x388] sm:$0xff]
    %v1714 = vld [vmem:[#allocation13 + $0x390] sm:$0xff]
    %v1715 = vld [vmem:[#allocation13 + $0x398] sm:$0xff]
    %v1716 = vld [vmem:[#allocation13 + $0x3a0] sm:$0xff]
    %v1717 = vld [vmem:[#allocation13 + $0x3a8] sm:$0xff]
    %v1718 = vld [vmem:[#allocation13 + $0x3b0] sm:$0xff]
    %v1719 = vld [vmem:[#allocation13 + $0x3b8] sm:$0xff]
    %v1720 = vld [vmem:[#allocation13 + $0x3c0] sm:$0xff]
    %v1721 = vld [vmem:[#allocation13 + $0x3c8] sm:$0xff]
    %v1722 = vld [vmem:[#allocation13 + $0x3d0] sm:$0xff]
    %v1723 = vld [vmem:[#allocation13 + $0x3d8] sm:$0xff]
    %v1724 = vld [vmem:[#allocation13 + $0x3e0] sm:$0xff]
    %v1725 = vld [vmem:[#allocation13 + $0x3e8] sm:$0xff]
    %v1726 = vld [vmem:[#allocation13 + $0x3f0] sm:$0xff]
    %v1727 = vld [vmem:[#allocation13 + $0x3f8] sm:$0xff]
    %v1728 = vld [vmem:[#allocation13 + $0x400] sm:$0xff]
    %v1729 = vld [vmem:[#allocation13 + $0x408] sm:$0xff]
    %v1730 = vld [vmem:[#allocation13 + $0x410] sm:$0xff]
    %v1731 = vld [vmem:[#allocation13 + $0x418] sm:$0xff]
    %v1732 = vld [vmem:[#allocation13 + $0x420] sm:$0xff]
    %v1733 = vld [vmem:[#allocation13 + $0x428] sm:$0xff]
    %v1734 = vld [vmem:[#allocation13 + $0x430] sm:$0xff]
    %v1735 = vld [vmem:[#allocation13 + $0x438] sm:$0xff]
    %v1736 = vld [vmem:[#allocation13 + $0x440] sm:$0xff]
    %v1737 = vld [vmem:[#allocation13 + $0x448] sm:$0xff]
    %v1738 = vld [vmem:[#allocation13 + $0x450] sm:$0xff]
    %v1739 = vld [vmem:[#allocation13 + $0x458] sm:$0xff]
    %v1740 = vld [vmem:[#allocation13 + $0x460] sm:$0xff]
    %v1741 = vld [vmem:[#allocation13 + $0x468] sm:$0xff]
    %v1742 = vld [vmem:[#allocation13 + $0x470] sm:$0xff]
    %v1743 = vld [vmem:[#allocation13 + $0x478] sm:$0xff]
    %v1744 = vld [vmem:[#allocation13 + $0x480] sm:$0xff]
    %v1745 = vld [vmem:[#allocation13 + $0x488] sm:$0xff]
    %v1746 = vld [vmem:[#allocation13 + $0x490] sm:$0xff]
    %v1747 = vld [vmem:[#allocation13 + $0x498] sm:$0xff]
    %v1748 = vld [vmem:[#allocation13 + $0x4a0] sm:$0xff]
    %v1749 = vld [vmem:[#allocation13 + $0x4a8] sm:$0xff]
    %v1750 = vld [vmem:[#allocation13 + $0x4b0] sm:$0xff]
    %v1751 = vld [vmem:[#allocation13 + $0x4b8] sm:$0xff]
    %v1752 = vld [vmem:[#allocation13 + $0x4c0] sm:$0xff]
    %v1753 = vld [vmem:[#allocation13 + $0x4c8] sm:$0xff]
    %v1754 = vld [vmem:[#allocation13 + $0x4d0] sm:$0xff]
    %v1755 = vld [vmem:[#allocation13 + $0x4d8] sm:$0xff]
    %v1756 = vld [vmem:[#allocation13 + $0x4e0] sm:$0xff]
    %v1757 = vld [vmem:[#allocation13 + $0x4e8] sm:$0xff]
    %v1758 = vld [vmem:[#allocation13 + $0x4f0] sm:$0xff]
    %v1759 = vld [vmem:[#allocation13 + $0x4f8] sm:$0xff]
    %v1760 = vld [vmem:[#allocation13 + $0x500] sm:$0xff]
    %v1761 = vld [vmem:[#allocation13 + $0x508] sm:$0xff]
    %v1762 = vld [vmem:[#allocation13 + $0x510] sm:$0xff]
    %v1763 = vld [vmem:[#allocation13 + $0x518] sm:$0xff]
    %v1764 = vld [vmem:[#allocation13 + $0x520] sm:$0xff]
    %v1765 = vld [vmem:[#allocation13 + $0x528] sm:$0xff]
    %v1766 = vld [vmem:[#allocation13 + $0x530] sm:$0xff]
    %v1767 = vld [vmem:[#allocation13 + $0x538] sm:$0xff]
    %v1768 = vld [vmem:[#allocation13 + $0x540] sm:$0xff]
    %v1769 = vld [vmem:[#allocation13 + $0x548] sm:$0xff]
    %v1770 = vld [vmem:[#allocation13 + $0x550] sm:$0xff]
    %v1771 = vld [vmem:[#allocation13 + $0x558] sm:$0xff]
    %v1772 = vld [vmem:[#allocation13 + $0x560] sm:$0xff]
    %v1773 = vld [vmem:[#allocation13 + $0x568] sm:$0xff]
    %v1774 = vld [vmem:[#allocation13 + $0x570] sm:$0xff]
    %v1775 = vld [vmem:[#allocation13 + $0x578] sm:$0xff]
    %v1776 = vld [vmem:[#allocation13 + $0x580] sm:$0xff]
    %v1777 = vld [vmem:[#allocation13 + $0x588] sm:$0xff]
    %v1778 = vld [vmem:[#allocation13 + $0x590] sm:$0xff]
    %v1779 = vld [vmem:[#allocation13 + $0x598] sm:$0xff]
    %v1780 = vld [vmem:[#allocation13 + $0x5a0] sm:$0xff]
    %v1781 = vld [vmem:[#allocation13 + $0x5a8] sm:$0xff]
    %v1782 = vld [vmem:[#allocation13 + $0x5b0] sm:$0xff]
    %v1783 = vld [vmem:[#allocation13 + $0x5b8] sm:$0xff]
    %v1784 = vld [vmem:[#allocation13 + $0x5c0] sm:$0xff]
    %v1785 = vld [vmem:[#allocation13 + $0x5c8] sm:$0xff]
    %v1786 = vld [vmem:[#allocation13 + $0x5d0] sm:$0xff]
    %v1787 = vld [vmem:[#allocation13 + $0x5d8] sm:$0xff]
    %v1788 = vld [vmem:[#allocation13 + $0x5e0] sm:$0xff]
    %v1789 = vld [vmem:[#allocation13 + $0x5e8] sm:$0xff]
    %v1790 = vld [vmem:[#allocation13 + $0x5f0] sm:$0xff]
    %v1791 = vld [vmem:[#allocation13 + $0x5f8] sm:$0xff]
    %v1792 = vld [vmem:[#allocation13 + $0x600] sm:$0xff]
    %v1793 = vld [vmem:[#allocation13 + $0x608] sm:$0xff]
    %v1794 = vld [vmem:[#allocation13 + $0x610] sm:$0xff]
    %v1795 = vld [vmem:[#allocation13 + $0x618] sm:$0xff]
    %v1796 = vld [vmem:[#allocation13 + $0x620] sm:$0xff]
    %v1797 = vld [vmem:[#allocation13 + $0x628] sm:$0xff]
    %v1798 = vld [vmem:[#allocation13 + $0x630] sm:$0xff]
    %v1799 = vld [vmem:[#allocation13 + $0x638] sm:$0xff]
    %v1800 = vld [vmem:[#allocation13 + $0x640] sm:$0xff]
    %v1801 = vld [vmem:[#allocation13 + $0x648] sm:$0xff]
    %v1802 = vld [vmem:[#allocation13 + $0x650] sm:$0xff]
    %v1803 = vld [vmem:[#allocation13 + $0x658] sm:$0xff]
    %v1804 = vld [vmem:[#allocation13 + $0x660] sm:$0xff]
    %v1805 = vld [vmem:[#allocation13 + $0x668] sm:$0xff]
    %v1806 = vld [vmem:[#allocation13 + $0x670] sm:$0xff]
    %v1807 = vld [vmem:[#allocation13 + $0x678] sm:$0xff]
    %v1808 = vld [vmem:[#allocation13 + $0x680] sm:$0xff]
    %v1809 = vld [vmem:[#allocation13 + $0x688] sm:$0xff]
    %v1810 = vld [vmem:[#allocation13 + $0x690] sm:$0xff]
    %v1811 = vld [vmem:[#allocation13 + $0x698] sm:$0xff]
    %v1812 = vld [vmem:[#allocation13 + $0x6a0] sm:$0xff]
    %v1813 = vld [vmem:[#allocation13 + $0x6a8] sm:$0xff]
    %v1814 = vld [vmem:[#allocation13 + $0x6b0] sm:$0xff]
    %v1815 = vld [vmem:[#allocation13 + $0x6b8] sm:$0xff]
    %v1816 = vld [vmem:[#allocation13 + $0x6c0] sm:$0xff]
    %v1817 = vld [vmem:[#allocation13 + $0x6c8] sm:$0xff]
    %v1818 = vld [vmem:[#allocation13 + $0x6d0] sm:$0xff]
    %v1819 = vld [vmem:[#allocation13 + $0x6d8] sm:$0xff]
    %v1820 = vld [vmem:[#allocation13 + $0x6e0] sm:$0xff]
    %v1821 = vld [vmem:[#allocation13 + $0x6e8] sm:$0xff]
    %v1822 = vld [vmem:[#allocation13 + $0x6f0] sm:$0xff]
    %v1823 = vld [vmem:[#allocation13 + $0x6f8] sm:$0xff]
    %v1824 = vld [vmem:[#allocation13 + $0x700] sm:$0xff]
    %v1825 = vld [vmem:[#allocation13 + $0x708] sm:$0xff]
    %v1826 = vld [vmem:[#allocation13 + $0x710] sm:$0xff]
    %v1827 = vld [vmem:[#allocation13 + $0x718] sm:$0xff]
    %v1828 = vld [vmem:[#allocation13 + $0x720] sm:$0xff]
    %v1829 = vld [vmem:[#allocation13 + $0x728] sm:$0xff]
    %v1830 = vld [vmem:[#allocation13 + $0x730] sm:$0xff]
    %v1831 = vld [vmem:[#allocation13 + $0x738] sm:$0xff]
    %v1832 = vld [vmem:[#allocation13 + $0x740] sm:$0xff]
    %v1833 = vld [vmem:[#allocation13 + $0x748] sm:$0xff]
    %v1834 = vld [vmem:[#allocation13 + $0x750] sm:$0xff]
    %v1835 = vld [vmem:[#allocation13 + $0x758] sm:$0xff]
    %v1836 = vld [vmem:[#allocation13 + $0x760] sm:$0xff]
    %v1837 = vld [vmem:[#allocation13 + $0x768] sm:$0xff]
    %v1838 = vld [vmem:[#allocation13 + $0x770] sm:$0xff]
    %v1839 = vld [vmem:[#allocation13 + $0x778] sm:$0xff]
    %v1840 = vld [vmem:[#allocation13 + $0x780] sm:$0xff]
    %v1841 = vld [vmem:[#allocation13 + $0x788] sm:$0xff]
    %v1842 = vld [vmem:[#allocation13 + $0x790] sm:$0xff]
    %v1843 = vld [vmem:[#allocation13 + $0x798] sm:$0xff]
    %v1844 = vld [vmem:[#allocation13 + $0x7a0] sm:$0xff]
    %v1845 = vld [vmem:[#allocation13 + $0x7a8] sm:$0xff]
    %v1846 = vld [vmem:[#allocation13 + $0x7b0] sm:$0xff]
    %v1847 = vld [vmem:[#allocation13 + $0x7b8] sm:$0xff]
    %v1848 = vld [vmem:[#allocation13 + $0x7c0] sm:$0xff]
    %v1849 = vld [vmem:[#allocation13 + $0x7c8] sm:$0xff]
    %v1850 = vld [vmem:[#allocation13 + $0x7d0] sm:$0xff]
    %v1851 = vld [vmem:[#allocation13 + $0x7d8] sm:$0xff]
    %v1852 = vld [vmem:[#allocation13 + $0x7e0] sm:$0xff]
    %v1853 = vld [vmem:[#allocation13 + $0x7e8] sm:$0xff]
    %v1854 = vld [vmem:[#allocation13 + $0x7f0] sm:$0xff]
    %v1855 = vld [vmem:[#allocation13 + $0x7f8] sm:$0xff]
    %1856 = vmatprep.subr.mxu0 %v1601
    %1857 = vmatpush1.msra.mxu0 %v1600
    %1858 = vmatprep.subr.mxu0 %v1605
    %1859 = vmatpush1.msra.mxu0 %v1604
    %1860 = vmatprep.subr.mxu0 %v1609
    %1861 = vmatpush1.msra.mxu0 %v1608
    %1862 = vmatprep.subr.mxu0 %v1613
    %1863 = vmatpush1.msra.mxu0 %v1612
    %1864 = vmatprep.subr.mxu0 %v1617
    %1865 = vmatpush1.msra.mxu0 %v1616
    %1866 = vmatprep.subr.mxu0 %v1621
    %1867 = vmatpush1.msra.mxu0 %v1620
    %1868 = vmatprep.subr.mxu0 %v1625
    %1869 = vmatpush1.msra.mxu0 %v1624
    %1870 = vmatprep.subr.mxu0 %v1629
    %1871 = vmatpush1.msra.mxu0 %v1628
    %1872 = vmatprep.subr.mxu0 %v1633
    %1873 = vmatpush1.msra.mxu0 %v1632
    %1874 = vmatprep.subr.mxu0 %v1637
    %1875 = vmatpush1.msra.mxu0 %v1636
    %1876 = vmatprep.subr.mxu0 %v1641
    %1877 = vmatpush1.msra.mxu0 %v1640
    %1878 = vmatprep.subr.mxu0 %v1645
    %1879 = vmatpush1.msra.mxu0 %v1644
    %1880 = vmatprep.subr.mxu0 %v1649
    %1881 = vmatpush1.msra.mxu0 %v1648
    %1882 = vmatprep.subr.mxu0 %v1653
    %1883 = vmatpush1.msra.mxu0 %v1652
    %1884 = vmatprep.subr.mxu0 %v1657
    %1885 = vmatpush1.msra.mxu0 %v1656
    %1886 = vmatprep.subr.mxu0 %v1661
    %1887 = vmatpush1.msra.mxu0 %v1660
    %1888 = vmatprep.subr.mxu0 %v1665
    %1889 = vmatpush1.msra.mxu0 %v1664
    %1890 = vmatprep.subr.mxu0 %v1669
    %1891 = vmatpush1.msra.mxu0 %v1668
    %1892 = vmatprep.subr.mxu0 %v1673
    %1893 = vmatpush1.msra.mxu0 %v1672
    %1894 = vmatprep.subr.mxu0 %v1677
    %1895 = vmatpush1.msra.mxu0 %v1676
    %1896 = vmatprep.subr.mxu0 %v1681
    %1897 = vmatpush1.msra.mxu0 %v1680
    %1898 = vmatprep.subr.mxu0 %v1685
    %1899 = vmatpush1.msra.mxu0 %v1684
    %1900 = vmatprep.subr.mxu0 %v1689
    %1901 = vmatpush1.msra.mxu0 %v1688
    %1902 = vmatprep.subr.mxu0 %v1693
    %1903 = vmatpush1.msra.mxu0 %v1692
    %1904 = vmatprep.subr.mxu0 %v1697
    %1905 = vmatpush1.msra.mxu0 %v1696
    %1906 = vmatprep.subr.mxu0 %v1701
    %1907 = vmatpush1.msra.mxu0 %v1700
    %1908 = vmatprep.subr.mxu0 %v1705
    %1909 = vmatpush1.msra.mxu0 %v1704
    %1910 = vmatprep.subr.mxu0 %v1709
    %1911 = vmatpush1.msra.mxu0 %v1708
    %1912 = vmatprep.subr.mxu0 %v1713
    %1913 = vmatpush1.msra.mxu0 %v1712
    %1914 = vmatprep.subr.mxu0 %v1717
    %1915 = vmatpush1.msra.mxu0 %v1716
    %1916 = vmatprep.subr.mxu0 %v1721
    %1917 = vmatpush1.msra.mxu0 %v1720
    %1918 = vmatprep.subr.mxu0 %v1725
    %1919 = vmatpush1.msra.mxu0 %v1724
    %1920 = vmatprep.mubr.f32.mxu0 %v1593
    %1921 = vmatmul.mubr.f32.gmra.mrb[0].mxu0 %v1592
    %v1922 = vpop.f32.mrb[0].mxu0
    %v1923 = vadd.f32 0.0, %v1922
    %v1924 = vpop.f32.mrb[0].mxu0
    %v1925 = vadd.f32 0.0, %v1924
    %1926 = vdwg.mxu0
    %1927 = vmatprep.subr.mxu0 %v1729
    %1928 = vmatpush1.msra.mxu0 %v1728
    %1929 = vmatprep.subr.mxu0 %v1733
    %1930 = vmatpush1.msra.mxu0 %v1732
    %1931 = vmatprep.subr.mxu0 %v1737
    %1932 = vmatpush1.msra.mxu0 %v1736
    %1933 = vmatprep.subr.mxu0 %v1741
    %1934 = vmatpush1.msra.mxu0 %v1740
    %1935 = vmatprep.subr.mxu0 %v1745
    %1936 = vmatpush1.msra.mxu0 %v1744
    %1937 = vmatprep.subr.mxu0 %v1749
    %1938 = vmatpush1.msra.mxu0 %v1748
    %1939 = vmatprep.subr.mxu0 %v1753
    %1940 = vmatpush1.msra.mxu0 %v1752
    %1941 = vmatprep.subr.mxu0 %v1757
    %1942 = vmatpush1.msra.mxu0 %v1756
    %1943 = vmatprep.subr.mxu0 %v1761
    %1944 = vmatpush1.msra.mxu0 %v1760
    %1945 = vmatprep.subr.mxu0 %v1765
    %1946 = vmatpush1.msra.mxu0 %v1764
    %1947 = vmatprep.subr.mxu0 %v1769
    %1948 = vmatpush1.msra.mxu0 %v1768
    %1949 = vmatprep.subr.mxu0 %v1773
    %1950 = vmatpush1.msra.mxu0 %v1772
    %1951 = vmatprep.subr.mxu0 %v1777
    %1952 = vmatpush1.msra.mxu0 %v1776
    %1953 = vmatprep.subr.mxu0 %v1781
    %1954 = vmatpush1.msra.mxu0 %v1780
    %1955 = vmatprep.subr.mxu0 %v1785
    %1956 = vmatpush1.msra.mxu0 %v1784
    %1957 = vmatprep.subr.mxu0 %v1789
    %1958 = vmatpush1.msra.mxu0 %v1788
    %1959 = vmatprep.subr.mxu0 %v1793
    %1960 = vmatpush1.msra.mxu0 %v1792
    %1961 = vmatprep.subr.mxu0 %v1797
    %1962 = vmatpush1.msra.mxu0 %v1796
    %1963 = vmatprep.subr.mxu0 %v1801
    %1964 = vmatpush1.msra.mxu0 %v1800
    %1965 = vmatprep.subr.mxu0 %v1805
    %1966 = vmatpush1.msra.mxu0 %v1804
    %1967 = vmatprep.subr.mxu0 %v1809
    %1968 = vmatpush1.msra.mxu0 %v1808
    %1969 = vmatprep.subr.mxu0 %v1813
    %1970 = vmatpush1.msra.mxu0 %v1812
    %1971 = vmatprep.subr.mxu0 %v1817
    %1972 = vmatpush1.msra.mxu0 %v1816
    %1973 = vmatprep.subr.mxu0 %v1821
    %1974 = vmatpush1.msra.mxu0 %v1820
    %1975 = vmatprep.subr.mxu0 %v1825
    %1976 = vmatpush1.msra.mxu0 %v1824
    %1977 = vmatprep.subr.mxu0 %v1829
    %1978 = vmatpush1.msra.mxu0 %v1828
    %1979 = vmatprep.subr.mxu0 %v1833
    %1980 = vmatpush1.msra.mxu0 %v1832
    %1981 = vmatprep.subr.mxu0 %v1837
    %1982 = vmatpush1.msra.mxu0 %v1836
    %1983 = vmatprep.subr.mxu0 %v1841
    %1984 = vmatpush1.msra.mxu0 %v1840
    %1985 = vmatprep.subr.mxu0 %v1845
    %1986 = vmatpush1.msra.mxu0 %v1844
    %1987 = vmatprep.subr.mxu0 %v1849
    %1988 = vmatpush1.msra.mxu0 %v1848
    %1989 = vmatprep.subr.mxu0 %v1853
    %1990 = vmatpush1.msra.mxu0 %v1852
    %1991 = vmatprep.mubr.f32.mxu0 %v1595
    %1992 = vmatmul.mubr.f32.gmra.mrb[0].mxu0 %v1594
    %v1993 = vpop.f32.mrb[0].mxu0
    %v1994 = vadd.f32 %v1923, %v1993
    %v1995 = vpop.f32.mrb[0].mxu0
    %v1996 = vadd.f32 %v1925, %v1995
    %1997 = vdwg.mxu0
    %1998 = vmatprep.subr.mxu0 %v1603
    %1999 = vmatpush1.msra.mxu0 %v1602
    %2000 = vmatprep.subr.mxu0 %v1607
    %2001 = vmatpush1.msra.mxu0 %v1606
    %2002 = vmatprep.subr.mxu0 %v1611
    %2003 = vmatpush1.msra.mxu0 %v1610
    %2004 = vmatprep.subr.mxu0 %v1615
    %2005 = vmatpush1.msra.mxu0 %v1614
    %2006 = vmatprep.subr.mxu0 %v1619
    %2007 = vmatpush1.msra.mxu0 %v1618
    %2008 = vmatprep.subr.mxu0 %v1623
    %2009 = vmatpush1.msra.mxu0 %v1622
    %2010 = vmatprep.subr.mxu0 %v1627
    %2011 = vmatpush1.msra.mxu0 %v1626
    %2012 = vmatprep.subr.mxu0 %v1631
    %2013 = vmatpush1.msra.mxu0 %v1630
    %2014 = vmatprep.subr.mxu0 %v1635
    %2015 = vmatpush1.msra.mxu0 %v1634
    %2016 = vmatprep.subr.mxu0 %v1639
    %2017 = vmatpush1.msra.mxu0 %v1638
    %2018 = vmatprep.subr.mxu0 %v1643
    %2019 = vmatpush1.msra.mxu0 %v1642
    %2020 = vmatprep.subr.mxu0 %v1647
    %2021 = vmatpush1.msra.mxu0 %v1646
    %2022 = vmatprep.subr.mxu0 %v1651
    %2023 = vmatpush1.msra.mxu0 %v1650
    %2024 = vmatprep.subr.mxu0 %v1655
    %2025 = vmatpush1.msra.mxu0 %v1654
    %2026 = vmatprep.subr.mxu0 %v1659
    %2027 = vmatpush1.msra.mxu0 %v1658
    %2028 = vmatprep.subr.mxu0 %v1663
    %2029 = vmatpush1.msra.mxu0 %v1662
    %2030 = vmatprep.subr.mxu0 %v1667
    %2031 = vmatpush1.msra.mxu0 %v1666
    %2032 = vmatprep.subr.mxu0 %v1671
    %2033 = vmatpush1.msra.mxu0 %v1670
    %2034 = vmatprep.subr.mxu0 %v1675
    %2035 = vmatpush1.msra.mxu0 %v1674
    %2036 = vmatprep.subr.mxu0 %v1679
    %2037 = vmatpush1.msra.mxu0 %v1678
    %2038 = vmatprep.subr.mxu0 %v1683
    %2039 = vmatpush1.msra.mxu0 %v1682
    %2040 = vmatprep.subr.mxu0 %v1687
    %2041 = vmatpush1.msra.mxu0 %v1686
    %2042 = vmatprep.subr.mxu0 %v1691
    %2043 = vmatpush1.msra.mxu0 %v1690
    %2044 = vmatprep.subr.mxu0 %v1695
    %2045 = vmatpush1.msra.mxu0 %v1694
    %2046 = vmatprep.subr.mxu0 %v1699
    %2047 = vmatpush1.msra.mxu0 %v1698
    %2048 = vmatprep.subr.mxu0 %v1703
    %2049 = vmatpush1.msra.mxu0 %v1702
    %2050 = vmatprep.subr.mxu0 %v1707
    %2051 = vmatpush1.msra.mxu0 %v1706
    %2052 = vmatprep.subr.mxu0 %v1711
    %2053 = vmatpush1.msra.mxu0 %v1710
    %2054 = vmatprep.subr.mxu0 %v1715
    %2055 = vmatpush1.msra.mxu0 %v1714
    %2056 = vmatprep.subr.mxu0 %v1719
    %2057 = vmatpush1.msra.mxu0 %v1718
    %2058 = vmatprep.subr.mxu0 %v1723
    %2059 = vmatpush1.msra.mxu0 %v1722
    %2060 = vmatprep.subr.mxu0 %v1727
    %2061 = vmatpush1.msra.mxu0 %v1726
    %2062 = vmatprep.mubr.f32.mxu0 %v1593
    %2063 = vmatmul.mubr.f32.gmra.mrb[0].mxu0 %v1592
    %v2064 = vpop.f32.mrb[0].mxu0
    %v2065 = vadd.f32 0.0, %v2064
    %v2066 = vpop.f32.mrb[0].mxu0
    %v2067 = vadd.f32 0.0, %v2066
    %2068 = vdwg.mxu0
    %2069 = vmatprep.subr.mxu0 %v1731
    %2070 = vmatpush1.msra.mxu0 %v1730
    %2071 = vmatprep.subr.mxu0 %v1735
    %2072 = vmatpush1.msra.mxu0 %v1734
    %2073 = vmatprep.subr.mxu0 %v1739
    %2074 = vmatpush1.msra.mxu0 %v1738
    %2075 = vmatprep.subr.mxu0 %v1743
    %2076 = vmatpush1.msra.mxu0 %v1742
    %2077 = vmatprep.subr.mxu0 %v1747
    %2078 = vmatpush1.msra.mxu0 %v1746
    %2079 = vmatprep.subr.mxu0 %v1751
    %2080 = vmatpush1.msra.mxu0 %v1750
    %2081 = vmatprep.subr.mxu0 %v1755
    %2082 = vmatpush1.msra.mxu0 %v1754
    %2083 = vmatprep.subr.mxu0 %v1759
    %2084 = vmatpush1.msra.mxu0 %v1758
    %2085 = vmatprep.subr.mxu0 %v1763
    %2086 = vmatpush1.msra.mxu0 %v1762
    %2087 = vmatprep.subr.mxu0 %v1767
    %2088 = vmatpush1.msra.mxu0 %v1766
    %2089 = vmatprep.subr.mxu0 %v1771
    %2090 = vmatpush1.msra.mxu0 %v1770
    %2091 = vmatprep.subr.mxu0 %v1775
    %2092 = vmatpush1.msra.mxu0 %v1774
    %2093 = vmatprep.subr.mxu0 %v1779
    %2094 = vmatpush1.msra.mxu0 %v1778
    %2095 = vmatprep.subr.mxu0 %v1783
    %2096 = vmatpush1.msra.mxu0 %v1782
    %2097 = vmatprep.subr.mxu0 %v1787
    %2098 = vmatpush1.msra.mxu0 %v1786
    %2099 = vmatprep.subr.mxu0 %v1791
    %2100 = vmatpush1.msra.mxu0 %v1790
    %2101 = vmatprep.subr.mxu0 %v1795
    %2102 = vmatpush1.msra.mxu0 %v1794
    %2103 = vmatprep.subr.mxu0 %v1799
    %2104 = vmatpush1.msra.mxu0 %v1798
    %2105 = vmatprep.subr.mxu0 %v1803
    %2106 = vmatpush1.msra.mxu0 %v1802
    %2107 = vmatprep.subr.mxu0 %v1807
    %2108 = vmatpush1.msra.mxu0 %v1806
    %2109 = vmatprep.subr.mxu0 %v1811
    %2110 = vmatpush1.msra.mxu0 %v1810
    %2111 = vmatprep.subr.mxu0 %v1815
    %2112 = vmatpush1.msra.mxu0 %v1814
    %2113 = vmatprep.subr.mxu0 %v1819
    %2114 = vmatpush1.msra.mxu0 %v1818
    %2115 = vmatprep.subr.mxu0 %v1823
    %2116 = vmatpush1.msra.mxu0 %v1822
    %2117 = vmatprep.subr.mxu0 %v1827
    %2118 = vmatpush1.msra.mxu0 %v1826
    %2119 = vmatprep.subr.mxu0 %v1831
    %2120 = vmatpush1.msra.mxu0 %v1830
    %2121 = vmatprep.subr.mxu0 %v1835
    %2122 = vmatpush1.msra.mxu0 %v1834
    %2123 = vmatprep.subr.mxu0 %v1839
    %2124 = vmatpush1.msra.mxu0 %v1838
    %2125 = vmatprep.subr.mxu0 %v1843
    %2126 = vmatpush1.msra.mxu0 %v1842
    %2127 = vmatprep.subr.mxu0 %v1847
    %2128 = vmatpush1.msra.mxu0 %v1846
    %2129 = vmatprep.subr.mxu0 %v1851
    %2130 = vmatpush1.msra.mxu0 %v1850
    %2131 = vmatprep.subr.mxu0 %v1855
    %2132 = vmatpush1.msra.mxu0 %v1854
    %2133 = vmatprep.mubr.f32.mxu0 %v1595
    %2134 = vmatmul.mubr.f32.gmra.mrb[0].mxu0 %v1594
    %v2135 = vpop.f32.mrb[0].mxu0
    %v2136 = vadd.f32 %v2065, %v2135
    %v2137 = vpop.f32.mrb[0].mxu0
    %v2138 = vadd.f32 %v2067, %v2137
    %2139 = vdwg.mxu0
    %2140 = vst [vmem:[#allocation15] sm:$0xff] %v1994
    %2141 = vst [vmem:[#allocation15 + $0x8] sm:$0xff] %v1996
    %2142 = vst [vmem:[#allocation15 + $0x10] sm:$0xff] %v2136
    %2143 = vst [vmem:[#allocation15 + $0x18] sm:$0xff] %v2138
    // Predicated region
    $region58: #{tpu_custom_call.1} parent=1 // pred_check
      _
    $region59: #{tpu_custom_call.1} parent=1 // pred_check_branch
      %2145 = sbr.rel (0) target = $region61
    $region60: #{tpu_custom_call.1} parent=1 // pred_region
      %s2147 = ssub.s32 512, 512
      %2148 = vsyncadd [#allocation4], %s2147
      %s2150 = sshll.u32 [#allocation14], 4
      %s2151 = int_to_ptr.vmem [resolvable:$true] %s2150
      %2153 = dma.vmem_to_hbm [thread:$0]  %s2151, 512, %s7, [#allocation4]
    $region61: #{tpu_custom_call.1} parent=1 // pred_fallthru
      _
    // Predicated region
    $region62: #{tpu_custom_call.1} parent=1 // pred_check
      _
    $region63: #{tpu_custom_call.1} parent=1 // pred_check_branch
      %2155 = sbr.rel (0) target = $region65
    $region64: #{tpu_custom_call.1} parent=1 // pred_region
      %s2157 = ssub.s32 512, 512
      %2158 = vsyncadd [#allocation16], %s2157
      %s2160 = sshll.u32 [#allocation15], 4
      %s2161 = int_to_ptr.vmem [resolvable:$true] %s2160
      %2163 = dma.vmem_to_hbm [thread:$0]  %s2161, 512, %s8, [#allocation16]
    $region65: #{tpu_custom_call.1} parent=1 // pred_fallthru
      _
    // Predicated region
    $region66: #{tpu_custom_call.1} parent=1 // pred_check
      _
    $region67: #{tpu_custom_call.1} parent=1 // pred_check_branch
      %2165 = sbr.rel (0) target = $region69
    $region68: #{tpu_custom_call.1} parent=1 // pred_region
      %2166 = dma.done [#allocation4], 512
    $region69: #{tpu_custom_call.1} parent=1 // pred_fallthru
      _
    // Predicated region
    $region70: #{tpu_custom_call.1} parent=1 // pred_check
      _
    $region71: #{tpu_custom_call.1} parent=1 // pred_check_branch
      %2168 = sbr.rel (0) target = $region73
    $region72: #{tpu_custom_call.1} parent=1 // pred_region
      %2169 = dma.done [#allocation16], 512
    $region73: #{tpu_custom_call.1} parent=1 // pred_fallthru
      _
    %2170 = vsyncpa [#allocation3], 1
    %2171 = vsyncpa [#allocation6], 1
    %2172 = vsyncpa [#allocation9], 1
    %2173 = vsyncpa [#allocation12], 1
    %2174 = vsyncpa [#allocation4], 1
    %2175 = vsyncpa [#allocation16], 1

</llo_original>
